<compile_context>
chip_gen: v7x
topology: tpu7x:2x2x1
jax: 0.10.0
libtpu: 0.0.40
codegen_flags: <defaults>
</compile_context>

<pallas_src>
import jax
import jax.numpy as jnp
from jax.experimental import pallas as pl
from jax.experimental.pallas import tpu as pltpu

BN_EPS = 1e-5


def _round_up(x, m):
    return (x + m - 1) // m * m


def _pad2(a, rows, cols):
    return jnp.pad(a, ((0, rows - a.shape[0]), (0, cols - a.shape[1])))


# ----------------------------------------------------------------------------------------
# Fused kernel: grid = (num_layer, num_edge_tiles)
# ----------------------------------------------------------------------------------------
def fused_gin_kernel(eps_ref,                           # SMEM (L,) f32    GIN eps per layer
                     x_ref,                             # VMEM (N, Dp)     atom embeddings
                     esrc_ref,                          # VMEM (Et, 1) i32 source node per edge
                     edst_ref,                          # VMEM (1, Et) i32 target node per edge
                     eattr_ref,                         # VMEM (Et, 1) f32 edge attribute
                     wb_ref,                            # VMEM (1, Dp) f32 bond-encoder weight
                     w1_ref, b1_ref, g1_ref, be1_ref,   # GIN MLP Linear1(bf16) + BatchNorm1d(2D)
                     w2_ref, b2_ref, g2_ref, be2_ref,   # GIN MLP Linear2(bf16) + outer BN1d(D)
                     out_ref,                            # VMEM (N, Dp) f32  carried node state / output
                     hb_ref,                             # scratch (N, Dp) bf16 cached node state
                     agg_ref):                           # scratch (N, Dp) f32  scatter-add accumulator
    l = pl.program_id(0)
    k = pl.program_id(1)
    n_l = pl.num_programs(0)
    n_k = pl.num_programs(1)
    N, Dp = agg_ref.shape
    Et = eattr_ref.shape[0]

    # very first grid step: initialize the carried node state from the atom embeddings.
    @pl.when((l == 0) & (k == 0))
    def _():
        out_ref[...] = x_ref[...]

    # start of each layer: refresh the layer-invariant bf16 cache and zero the accumulator.
    @pl.when(k == 0)
    def _():
        hb_ref[...] = out_ref[...].astype(jnp.bfloat16)
        agg_ref[...] = jnp.zeros_like(agg_ref)

    # ---- message + aggregate over this edge tile (gather/scatter as bf16 MXU matmuls) ----
    # NOTE: an edge index >= N (used for padding) gives an all-zero one-hot row/column and is
    #       silently dropped; genuinely out-of-range indices are assumed not to occur.
    iota_en = jax.lax.broadcasted_iota(jnp.int32, (Et, N), 1)           # [e, n] = n
    src_oh_t = (iota_en == esrc_ref[...]).astype(jnp.bfloat16)          # (Et, N)  pre-transposed
    iota_ne = jax.lax.broadcasted_iota(jnp.int32, (N, Et), 0)           # [n, e] = n
    dst_oh = (iota_ne == edst_ref[...]).astype(jnp.bfloat16)            # (N, Et)

    # bond encoder: Linear(1, D, bias=False) -> (Et, Dp)
    edge_emb = eattr_ref[...] * wb_ref[...]

    # gather x_j = h[src]: canonical (Et,N)x(N,Dp) MXU contraction, f32 accumulation
    x_j = jnp.dot(src_oh_t, hb_ref[...], preferred_element_type=jnp.float32)

    # message = relu(x_j + edge_attr); scatter-add onto target nodes
    msg = jnp.maximum(x_j + edge_emb, 0.0)
    agg_ref[...] += jnp.dot(dst_oh, msg.astype(jnp.bfloat16),
                            preferred_element_type=jnp.float32)

    # ---- last edge tile of this layer: GIN combine + MLP + BatchNorms (+ ReLU) ----
    @pl.when(k == n_k - 1)
    def _():
        eps = eps_ref[l]
        pre = (1.0 + eps) * out_ref[...] + agg_ref[...]

        # MLP: Linear(D, 2D) -> BatchNorm1d(2D) -> ReLU -> Linear(2D, D)  (bf16 MXU, f32 acc)
        h1 = jnp.dot(pre.astype(jnp.bfloat16), w1_ref[...],
                     preferred_element_type=jnp.float32) + b1_ref[...]
        m1 = jnp.mean(h1, axis=0, keepdims=True)
        v1 = jnp.maximum(jnp.mean(h1 * h1, axis=0, keepdims=True) - m1 * m1, 0.0)
        h1 = jnp.maximum(
            (h1 - m1) * jax.lax.rsqrt(v1 + BN_EPS) * g1_ref[...] + be1_ref[...], 0.0)

        h2 = jnp.dot(h1.astype(jnp.bfloat16), w2_ref[...],
                     preferred_element_type=jnp.float32) + b2_ref[...]

        # outer BatchNorm1d(D) of the GNN module (training-mode batch statistics)
        m2 = jnp.mean(h2, axis=0, keepdims=True)
        v2 = jnp.maximum(jnp.mean(h2 * h2, axis=0, keepdims=True) - m2 * m2, 0.0)
        h2 = (h2 - m2) * jax.lax.rsqrt(v2 + BN_EPS) * g2_ref[...] + be2_ref[...]

        # ReLU on every layer except the last (dropout with p=0 is the identity)
        relu_w = (l < n_l - 1).astype(jnp.float32)
        out_ref[...] = relu_w * jnp.maximum(h2, 0.0) + (1.0 - relu_w) * h2


# ----------------------------------------------------------------------------------------
# Wrapper
# ----------------------------------------------------------------------------------------
def _stack_params(layer_params, Dp, Hp):
    """Stack per-layer params along a leading layer axis, zero-padded lane-dense.

    w1/w2 are shipped as bf16 (halves weight DMA + double-buffered VMEM); the small
    bias / gamma / beta / bond-encoder vectors stay f32.
    """
    eps = jnp.stack([jnp.asarray(p["eps"], jnp.float32).reshape(()) for p in layer_params])
    wb = jnp.stack([_pad2(p["w_bond"], 1, Dp) for p in layer_params]).astype(jnp.float32)
    w1 = jnp.stack([_pad2(p["w1"], Dp, Hp) for p in layer_params]).astype(jnp.bfloat16)
    b1 = jnp.stack([_pad2(p["b1"], 1, Hp) for p in layer_params]).astype(jnp.float32)
    g1 = jnp.stack([_pad2(p["bn1_g"], 1, Hp) for p in layer_params]).astype(jnp.float32)
    be1 = jnp.stack([_pad2(p["bn1_b"], 1, Hp) for p in layer_params]).astype(jnp.float32)
    w2 = jnp.stack([_pad2(p["w2"], Hp, Dp) for p in layer_params]).astype(jnp.bfloat16)
    b2 = jnp.stack([_pad2(p["b2"], 1, Dp) for p in layer_params]).astype(jnp.float32)
    g2 = jnp.stack([_pad2(p["bn_out_g"], 1, Dp) for p in layer_params]).astype(jnp.float32)
    be2 = jnp.stack([_pad2(p["bn_out_b"], 1, Dp) for p in layer_params]).astype(jnp.float32)
    return eps, wb, w1, b1, g1, be1, w2, b2, g2, be2


def gnn_forward(x_atoms, edge_index, edge_attr, atom_table, layer_params,
                *, max_edge_tile=512):
    # atom encoder (plain-JAX glue) — see TODO(synk) at top of file.
    h0 = jnp.take(atom_table, x_atoms, axis=0).astype(jnp.float32)   # (N, D)
    N, D = h0.shape
    L = len(layer_params)
    E = edge_index.shape[1]

    Dp = _round_up(D, 128)           # lane-dense feature width
    Hp = _round_up(2 * D, 128)       # lane-dense hidden width of the GIN MLP

    # --- edge tiling: always 128-aligned, padded with no-op edges (index N, attr 0) so every
    #     DMA / one-hot / MXU shape is lane-dense.  max_edge_tile bounds VMEM per step
    #     (conservative for v7x's 64 MiB; v5e/v6e could afford larger tiles).
    e_tile = min(_round_up(max_edge_tile, 128), _round_up(E, 128))
    e_pad = _round_up(E, e_tile)
    n_e_tiles = e_pad // e_tile

    src = edge_index[0].astype(jnp.int32)
    dst = edge_index[1].astype(jnp.int32)
    eattr = edge_attr.astype(jnp.float32)
    if e_pad != E:
        extra = e_pad - E
        src = jnp.concatenate([src, jnp.full((extra,), N, jnp.int32)])   # index N == dropped
        dst = jnp.concatenate([dst, jnp.full((extra,), N, jnp.int32)])
        eattr = jnp.concatenate([eattr, jnp.zeros((extra, 1), jnp.float32)], axis=0)
    esrc = src.reshape(e_pad, 1)     # sublane-major -> transposed (Et, N) one-hot for gather
    edst = dst.reshape(1, e_pad)     # lane-major    -> (N, Et) one-hot for scatter

    x0 = _pad2(h0, N, Dp)
    eps, wb, w1, b1, g1, be1, w2, b2, g2, be2 = _stack_params(layer_params, Dp, Hp)

    smem_spec = pl.BlockSpec(memory_space=pltpu.MemorySpace.SMEM)
    node_spec = pl.BlockSpec((N, Dp), lambda l, k: (0, 0))

    def per_layer(shape):
        return pl.BlockSpec(shape, lambda l, k: (l, 0, 0))

    grid_spec = pltpu.PrefetchScalarGridSpec(
        num_scalar_prefetch=0,
        grid=(L, n_e_tiles),
        in_specs=[
            smem_spec,                                          # eps          (L,)
            node_spec,                                          # x0           (N, Dp)
            pl.BlockSpec((e_tile, 1), lambda l, k: (k, 0)),     # edge src     (E_pad, 1)
            pl.BlockSpec((1, e_tile), lambda l, k: (0, k)),     # edge dst     (1, E_pad)
            pl.BlockSpec((e_tile, 1), lambda l, k: (k, 0)),     # edge attr    (E_pad, 1)
            per_layer((None, 1, Dp)),                           # w_bond
            per_layer((None, Dp, Hp)),                          # w1  (bf16)
            per_layer((None, 1, Hp)),                           # b1
            per_layer((None, 1, Hp)),                           # bn1 gamma
            per_layer((None, 1, Hp)),                           # bn1 beta
            per_layer((None, Hp, Dp)),                          # w2  (bf16)
            per_layer((None, 1, Dp)),                           # b2
            per_layer((None, 1, Dp)),                           # outer-bn gamma
            per_layer((None, 1, Dp)),                           # outer-bn beta
        ],
        out_specs=node_spec,                                    # constant block -> VMEM-resident
        scratch_shapes=[pltpu.VMEM((N, Dp), jnp.bfloat16),      # cached bf16 node state
                        pltpu.VMEM((N, Dp), jnp.float32)],      # scatter-add accumulator
    )

    out_pad = pl.pallas_call(
        fused_gin_kernel,
        out_shape=jax.ShapeDtypeStruct((N, Dp), jnp.float32),
        grid_spec=grid_spec,
        compiler_params=pltpu.CompilerParams(
            dimension_semantics=("arbitrary", "arbitrary"),
            vmem_limit_bytes=48 * 1024 * 1024,      # < 64 MiB physical VMEM on v7x
        ),
    )(eps, x0, esrc, edst, eattr,
      wb, w1, b1, g1, be1, w2, b2, g2, be2)

    return out_pad[:, :D]                            # drop lane padding; JK='last'


# ---------------- pure-JAX reference (for correctness check) ----------------
def gin_layer_ref(x, edge_index, edge_attr, p, apply_relu):
    edge_emb = edge_attr * p["w_bond"]
    x_j = x[edge_index[0]]
    msg = jnp.maximum(x_j + edge_emb, 0.0)
    agg = jnp.zeros_like(x).at[edge_index[1]].add(msg)
    pre = (1.0 + p["eps"]) * x + agg
    h1 = pre @ p["w1"] + p["b1"]
    m1 = jnp.mean(h1, axis=0, keepdims=True)
    v1 = jnp.mean((h1 - m1) ** 2, axis=0, keepdims=True)
    h1 = jnp.maximum((h1 - m1) / jnp.sqrt(v1 + BN_EPS) * p["bn1_g"] + p["bn1_b"], 0.0)
    h2 = h1 @ p["w2"] + p["b2"]
    m2 = jnp.mean(h2, axis=0, keepdims=True)
    v2 = jnp.mean((h2 - m2) ** 2, axis=0, keepdims=True)
    h2 = (h2 - m2) / jnp.sqrt(v2 + BN_EPS) * p["bn_out_g"] + p["bn_out_b"]
    return jnp.maximum(h2, 0.0) if apply_relu else h2


def gnn_forward_ref(x_atoms, edge_index, edge_attr, atom_table, layer_params):
    h = jnp.take(atom_table, x_atoms, axis=0)
    for layer, p in enumerate(layer_params):
        h = gin_layer_ref(h, edge_index, edge_attr, p,
                          apply_relu=(layer != len(layer_params) - 1))
    return h


# ---------------- deterministic parameter construction ----------------
def make_params(key, num_layer, emb_dim, num_atom_types=10):
    keys = jax.random.split(key, 1 + num_layer * 8)
    atom_table = jax.random.normal(keys[0], (num_atom_types, emb_dim), jnp.float32) * 0.5
    layer_params = []
    for l in range(num_layer):
        ks = keys[1 + 8 * l: 9 + 8 * l]
        layer_params.append(dict(
            w_bond=jax.random.normal(ks[0], (1, emb_dim), jnp.float32) * 0.2,
            eps=jax.random.normal(ks[1], (), jnp.float32) * 0.05,
            w1=jax.random.normal(ks[2], (emb_dim, 2 * emb_dim), jnp.float32) * 0.1,
            b1=jax.random.normal(ks[3], (1, 2 * emb_dim), jnp.float32) * 0.05,
            bn1_g=1.0 + jax.random.normal(ks[4], (1, 2 * emb_dim), jnp.float32) * 0.05,
            bn1_b=jax.random.normal(ks[5], (1, 2 * emb_dim), jnp.float32) * 0.05,
            w2=jax.random.normal(ks[6], (2 * emb_dim, emb_dim), jnp.float32) * 0.1,
            b2=jax.random.normal(ks[7], (1, emb_dim), jnp.float32) * 0.05,
            bn_out_g=jnp.ones((1, emb_dim), jnp.float32),
            bn_out_b=jnp.zeros((1, emb_dim), jnp.float32),
        ))
    return atom_table, layer_params


if __name__ == "__main__":
    key = jax.random.PRNGKey(0)
    N, E, emb_dim, num_layer = 16, 32, 32, 2

    k_atoms, k_src, k_dst, k_attr, k_par = jax.random.split(key, 5)
    x_atoms = jax.random.randint(k_atoms, (N,), 0, 10, dtype=jnp.int32)
    edge_index = jnp.stack([
        jax.random.randint(k_src, (E,), 0, N, dtype=jnp.int32),   # source (x_j)
        jax.random.randint(k_dst, (E,), 0, N, dtype=jnp.int32),   # target (aggregation)
    ], axis=0)                                                     # (2, E)
    edge_attr = jax.random.uniform(k_attr, (E, 1), jnp.float32)

    atom_table, layer_params = make_params(k_par, num_layer, emb_dim)

    out = jax.block_until_ready(
        gnn_forward(x_atoms, edge_index, edge_attr, atom_table, layer_params))
    ref = jax.block_until_ready(
        gnn_forward_ref(x_atoms, edge_index, edge_attr, atom_table, layer_params))

    assert out.shape == (N, emb_dim)
    assert bool(jnp.all(jnp.isfinite(out)))
    # bf16 operands on the gather/scatter and MLP MXU paths (f32 accumulation) -> wider
    # tolerance than a pure-f32 comparison
    assert bool(jnp.allclose(out, ref, atol=5e-2, rtol=5e-2)), \
        f"max abs diff {float(jnp.max(jnp.abs(out - ref)))}"

    print("KERNEL_OK")
</pallas_src>

<mosaic_0001>
module attributes {stable_mosaic.version = 11 : i64} {
  func.func @fused_gin_kernel(%arg0: i32, %arg1: i32, %arg2: memref<2xf32, #tpu.memory_space<smem>>, %arg3: memref<16x128xf32, #tpu.memory_space<vmem>>, %arg4: memref<128x1xi32, #tpu.memory_space<vmem>>, %arg5: memref<1x128xi32, #tpu.memory_space<vmem>>, %arg6: memref<128x1xf32, #tpu.memory_space<vmem>>, %arg7: memref<1x1x128xf32, #tpu.memory_space<vmem>>, %arg8: memref<1x128x128xbf16, #tpu.memory_space<vmem>>, %arg9: memref<1x1x128xf32, #tpu.memory_space<vmem>>, %arg10: memref<1x1x128xf32, #tpu.memory_space<vmem>>, %arg11: memref<1x1x128xf32, #tpu.memory_space<vmem>>, %arg12: memref<1x128x128xbf16, #tpu.memory_space<vmem>>, %arg13: memref<1x1x128xf32, #tpu.memory_space<vmem>>, %arg14: memref<1x1x128xf32, #tpu.memory_space<vmem>>, %arg15: memref<1x1x128xf32, #tpu.memory_space<vmem>>, %arg16: memref<16x128xf32, #tpu.memory_space<vmem>>, %arg17: memref<16x128xbf16, #tpu.memory_space<vmem>>, %arg18: memref<16x128xf32, #tpu.memory_space<vmem>>) attributes {dimension_semantics = [#tpu.dimension_semantics<arbitrary>, #tpu.dimension_semantics<arbitrary>], iteration_bounds = array<i64: 2, 1>, scalar_prefetch = 0 : i64, scratch_operands = 2 : i64, tpu.core_type = #tpu.core_type<tc>, window_params = [{transform_indices = @transform_0, window_bounds = array<i64: 2>}, {pipeline_mode = #tpu.pipeline_mode<synchronous>, transform_indices = @transform_1, window_bounds = array<i64: 16, 128>}, {transform_indices = @transform_2, window_bounds = array<i64: 128, 1>}, {transform_indices = @transform_3, window_bounds = array<i64: 1, 128>}, {transform_indices = @transform_4, window_bounds = array<i64: 128, 1>}, {transform_indices = @transform_5, window_bounds = array<i64: 1, 1, 128>}, {transform_indices = @transform_6, window_bounds = array<i64: 1, 128, 128>}, {transform_indices = @transform_7, window_bounds = array<i64: 1, 1, 128>}, {transform_indices = @transform_8, window_bounds = array<i64: 1, 1, 128>}, {transform_indices = @transform_9, window_bounds = array<i64: 1, 1, 128>}, {transform_indices = @transform_10, window_bounds = array<i64: 1, 128, 128>}, {transform_indices = @transform_11, window_bounds = array<i64: 1, 1, 128>}, {transform_indices = @transform_12, window_bounds = array<i64: 1, 1, 128>}, {transform_indices = @transform_13, window_bounds = array<i64: 1, 1, 128>}, {pipeline_mode = #tpu.pipeline_mode<synchronous>, transform_indices = @transform_14, window_bounds = array<i64: 16, 128>}]} {
    %c0_i32 = arith.constant 0 : i32
    %0 = arith.cmpi eq, %arg0, %c0_i32 : i32
    %c0_i32_0 = arith.constant 0 : i32
    %1 = arith.cmpi eq, %arg1, %c0_i32_0 : i32
    %2 = arith.andi %0, %1 : i1
    %3 = arith.extui %2 : i1 to i32
    %c0_i32_1 = arith.constant 0 : i32
    %4 = arith.cmpi ne, %3, %c0_i32_1 : i32
    scf.if %4 {
      %c0_22 = arith.constant 0 : index
      %c0_23 = arith.constant 0 : index
      %41 = vector.load %arg3[%c0_22, %c0_23] : memref<16x128xf32, #tpu.memory_space<vmem>>, vector<16x128xf32>
      %c0_24 = arith.constant 0 : index
      %c0_25 = arith.constant 0 : index
      %42 = vector.load %arg16[%c0_24, %c0_25] : memref<16x128xf32, #tpu.memory_space<vmem>>, vector<16x128xf32>
      tpu.vector_store %arg16[%c0_24, %c0_25], %41 {strides = array<i32>} : memref<16x128xf32, #tpu.memory_space<vmem>>, vector<16x128xf32>,
    } else {
    }
    %c0_i32_2 = arith.constant 0 : i32
    %5 = arith.cmpi eq, %arg1, %c0_i32_2 : i32
    %6 = arith.extui %5 : i1 to i32
    %c0_i32_3 = arith.constant 0 : i32
    %7 = arith.cmpi ne, %6, %c0_i32_3 : i32
    scf.if %7 {
      %c0_22 = arith.constant 0 : index
      %c0_23 = arith.constant 0 : index
      %41 = vector.load %arg16[%c0_22, %c0_23] : memref<16x128xf32, #tpu.memory_space<vmem>>, vector<16x128xf32>
      %42 = arith.truncf %41 : vector<16x128xf32> to vector<16x128xbf16>
      %c0_24 = arith.constant 0 : index
      %c0_25 = arith.constant 0 : index
      %43 = vector.load %arg17[%c0_24, %c0_25] : memref<16x128xbf16, #tpu.memory_space<vmem>>, vector<16x128xbf16>
      tpu.vector_store %arg17[%c0_24, %c0_25], %42 {strides = array<i32>} : memref<16x128xbf16, #tpu.memory_space<vmem>>, vector<16x128xbf16>,
      %cst_26 = arith.constant 0.000000e+00 : f32
      %44 = vector.broadcast %cst_26 : f32 to vector<16x128xf32>
      %c0_27 = arith.constant 0 : index
      %c0_28 = arith.constant 0 : index
      %45 = vector.load %arg18[%c0_27, %c0_28] : memref<16x128xf32, #tpu.memory_space<vmem>>, vector<16x128xf32>
      tpu.vector_store %arg18[%c0_27, %c0_28], %44 {strides = array<i32>} : memref<16x128xf32, #tpu.memory_space<vmem>>, vector<16x128xf32>,
    } else {
    }
    %8 = tpu.iota {dimensions = array<i32: 1>} : vector<128x16xi32>
    %c0 = arith.constant 0 : index
    %c0_4 = arith.constant 0 : index
    %9 = vector.load %arg4[%c0, %c0_4] : memref<128x1xi32, #tpu.memory_space<vmem>>, vector<128x1xi32>
    %10 = vector.broadcast %9 : vector<128x1xi32> to vector<128x16xi32>
    %11 = arith.cmpi eq, %8, %10 : vector<128x16xi32>
    %12 = arith.extui %11 : vector<128x16xi1> to vector<128x16xi32>
    %13 = arith.sitofp %12 : vector<128x16xi32> to vector<128x16xf32>
    %14 = arith.truncf %13 : vector<128x16xf32> to vector<128x16xbf16>
    %15 = tpu.iota {dimensions = array<i32: 0>} : vector<16x128xi32>
    %c0_5 = arith.constant 0 : index
    %c0_6 = arith.constant 0 : index
    %16 = vector.load %arg5[%c0_5, %c0_6] : memref<1x128xi32, #tpu.memory_space<vmem>>, vector<1x128xi32>
    %17 = vector.broadcast %16 : vector<1x128xi32> to vector<16x128xi32>
    %18 = arith.cmpi eq, %15, %17 : vector<16x128xi32>
    %19 = arith.extui %18 : vector<16x128xi1> to vector<16x128xi32>
    %20 = arith.sitofp %19 : vector<16x128xi32> to vector<16x128xf32>
    %21 = arith.truncf %20 : vector<16x128xf32> to vector<16x128xbf16>
    %c0_7 = arith.constant 0 : index
    %c0_8 = arith.constant 0 : index
    %22 = vector.load %arg6[%c0_7, %c0_8] : memref<128x1xf32, #tpu.memory_space<vmem>>, vector<128x1xf32>
    %c0_9 = arith.constant 0 : index
    %c0_10 = arith.constant 0 : index
    %c0_11 = arith.constant 0 : index
    %23 = vector.load %arg7[%c0_9, %c0_10, %c0_11] : memref<1x1x128xf32, #tpu.memory_space<vmem>>, vector<1x1x128xf32>
    %24 = vector.shape_cast %23 : vector<1x1x128xf32> to vector<1x128xf32>
    %25 = vector.broadcast %22 : vector<128x1xf32> to vector<128x128xf32>
    %26 = vector.broadcast %24 : vector<1x128xf32> to vector<128x128xf32>
    %27 = arith.mulf %25, %26 : vector<128x128xf32>
    %c0_12 = arith.constant 0 : index
    %c0_13 = arith.constant 0 : index
    %28 = vector.load %arg17[%c0_12, %c0_13] : memref<16x128xbf16, #tpu.memory_space<vmem>>, vector<16x128xbf16>
    %cst = arith.constant dense<0.000000e+00> : vector<128x128xf32>
    %29 = tpu.matmul %14, %28, %cst {dimension_numbers = #tpu.dot_dimension_numbers<[1], [0], [0], [1], [0, 0, 1, 1], [], []>} : vector<128x16xbf16>, vector<16x128xbf16>, vector<128x128xf32> -> vector<128x128xf32>
    %30 = arith.addf %29, %27 : vector<128x128xf32>
    %cst_14 = arith.constant 0.000000e+00 : f32
    %31 = vector.broadcast %cst_14 : f32 to vector<128x128xf32>
    %32 = arith.maximumf %30, %31 : vector<128x128xf32>
    %c0_15 = arith.constant 0 : index
    %c0_16 = arith.constant 0 : index
    %33 = vector.load %arg18[%c0_15, %c0_16] : memref<16x128xf32, #tpu.memory_space<vmem>>, vector<16x128xf32>
    %34 = arith.truncf %32 : vector<128x128xf32> to vector<128x128xbf16>
    %cst_17 = arith.constant dense<0.000000e+00> : vector<16x128xf32>
    %35 = tpu.matmul %21, %34, %cst_17 {dimension_numbers = #tpu.dot_dimension_numbers<[1], [0], [0], [1], [0, 0, 1, 1], [], []>} : vector<16x128xbf16>, vector<128x128xbf16>, vector<16x128xf32> -> vector<16x128xf32>
    %36 = arith.addf %33, %35 : vector<16x128xf32>
    %c0_18 = arith.constant 0 : index
    %c0_19 = arith.constant 0 : index
    %37 = vector.load %arg18[%c0_18, %c0_19] : memref<16x128xf32, #tpu.memory_space<vmem>>, vector<16x128xf32>
    tpu.vector_store %arg18[%c0_18, %c0_19], %36 {strides = array<i32>} : memref<16x128xf32, #tpu.memory_space<vmem>>, vector<16x128xf32>,
    %c0_i32_20 = arith.constant 0 : i32
    %38 = arith.cmpi eq, %arg1, %c0_i32_20 : i32
    %39 = arith.extui %38 : i1 to i32
    %c0_i32_21 = arith.constant 0 : i32
    %40 = arith.cmpi ne, %39, %c0_i32_21 : i32
    scf.if %40 {
      %41 = arith.index_cast %arg0 : i32 to index
      %42 = memref.load %arg2[%41] : memref<2xf32, #tpu.memory_space<smem>>
      %cst_22 = arith.constant 1.000000e+00 : f32
      %43 = arith.addf %cst_22, %42 : f32
      %c0_23 = arith.constant 0 : index
      %c0_24 = arith.constant 0 : index
      %44 = vector.load %arg16[%c0_23, %c0_24] : memref<16x128xf32, #tpu.memory_space<vmem>>, vector<16x128xf32>
      %45 = vector.broadcast %43 : f32 to vector<16x128xf32>
      %46 = arith.mulf %45, %44 : vector<16x128xf32>
      %c0_25 = arith.constant 0 : index
      %c0_26 = arith.constant 0 : index
      %47 = vector.load %arg18[%c0_25, %c0_26] : memref<16x128xf32, #tpu.memory_space<vmem>>, vector<16x128xf32>
      %48 = arith.addf %46, %47 : vector<16x128xf32>
      %49 = arith.truncf %48 : vector<16x128xf32> to vector<16x128xbf16>
      %c0_27 = arith.constant 0 : index
      %c0_28 = arith.constant 0 : index
      %c0_29 = arith.constant 0 : index
      %50 = vector.load %arg8[%c0_27, %c0_28, %c0_29] : memref<1x128x128xbf16, #tpu.memory_space<vmem>>, vector<1x128x128xbf16>
      %51 = vector.shape_cast %50 : vector<1x128x128xbf16> to vector<128x128xbf16>
      %cst_30 = arith.constant dense<0.000000e+00> : vector<16x128xf32>
      %52 = tpu.matmul %49, %51, %cst_30 {dimension_numbers = #tpu.dot_dimension_numbers<[1], [0], [0], [1], [0, 0, 1, 1], [], []>} : vector<16x128xbf16>, vector<128x128xbf16>, vector<16x128xf32> -> vector<16x128xf32>
      %c0_31 = arith.constant 0 : index
      %c0_32 = arith.constant 0 : index
      %c0_33 = arith.constant 0 : index
      %53 = vector.load %arg9[%c0_31, %c0_32, %c0_33] : memref<1x1x128xf32, #tpu.memory_space<vmem>>, vector<1x1x128xf32>
      %54 = vector.shape_cast %53 : vector<1x1x128xf32> to vector<1x128xf32>
      %55 = vector.broadcast %54 : vector<1x128xf32> to vector<16x128xf32>
      %56 = arith.addf %52, %55 : vector<16x128xf32>
      %cst_34 = arith.constant dense<0.000000e+00> : vector<128xf32>
      %57 = vector.multi_reduction <add>, %56, %cst_34 [0] : vector<16x128xf32> to vector<128xf32>
      %58 = vector.shape_cast %57 : vector<128xf32> to vector<1x128xf32>
      %cst_35 = arith.constant 1.600000e+01 : f32
      %59 = vector.broadcast %cst_35 : f32 to vector<1x128xf32>
      %60 = arith.divf %58, %59 : vector<1x128xf32>
      %61 = arith.mulf %56, %56 : vector<16x128xf32>
      %cst_36 = arith.constant dense<0.000000e+00> : vector<128xf32>
      %62 = vector.multi_reduction <add>, %61, %cst_36 [0] : vector<16x128xf32> to vector<128xf32>
      %63 = vector.shape_cast %62 : vector<128xf32> to vector<1x128xf32>
      %cst_37 = arith.constant 1.600000e+01 : f32
      %64 = vector.broadcast %cst_37 : f32 to vector<1x128xf32>
      %65 = arith.divf %63, %64 : vector<1x128xf32>
      %66 = arith.mulf %60, %60 : vector<1x128xf32>
      %67 = arith.subf %65, %66 : vector<1x128xf32>
      %cst_38 = arith.constant 0.000000e+00 : f32
      %68 = vector.broadcast %cst_38 : f32 to vector<1x128xf32>
      %69 = arith.maximumf %67, %68 : vector<1x128xf32>
      %70 = vector.broadcast %60 : vector<1x128xf32> to vector<16x128xf32>
      %71 = arith.subf %56, %70 : vector<16x128xf32>
      %cst_39 = arith.constant 9.99999974E-6 : f32
      %72 = vector.broadcast %cst_39 : f32 to vector<1x128xf32>
      %73 = arith.addf %69, %72 : vector<1x128xf32>
      %74 = math.rsqrt %73 : vector<1x128xf32>
      %75 = vector.broadcast %74 : vector<1x128xf32> to vector<16x128xf32>
      %76 = arith.mulf %71, %75 : vector<16x128xf32>
      %c0_40 = arith.constant 0 : index
      %c0_41 = arith.constant 0 : index
      %c0_42 = arith.constant 0 : index
      %77 = vector.load %arg10[%c0_40, %c0_41, %c0_42] : memref<1x1x128xf32, #tpu.memory_space<vmem>>, vector<1x1x128xf32>
      %78 = vector.shape_cast %77 : vector<1x1x128xf32> to vector<1x128xf32>
      %79 = vector.broadcast %78 : vector<1x128xf32> to vector<16x128xf32>
      %80 = arith.mulf %76, %79 : vector<16x128xf32>
      %c0_43 = arith.constant 0 : index
      %c0_44 = arith.constant 0 : index
      %c0_45 = arith.constant 0 : index
      %81 = vector.load %arg11[%c0_43, %c0_44, %c0_45] : memref<1x1x128xf32, #tpu.memory_space<vmem>>, vector<1x1x128xf32>
      %82 = vector.shape_cast %81 : vector<1x1x128xf32> to vector<1x128xf32>
      %83 = vector.broadcast %82 : vector<1x128xf32> to vector<16x128xf32>
      %84 = arith.addf %80, %83 : vector<16x128xf32>
      %cst_46 = arith.constant 0.000000e+00 : f32
      %85 = vector.broadcast %cst_46 : f32 to vector<16x128xf32>
      %86 = arith.maximumf %84, %85 : vector<16x128xf32>
      %87 = arith.truncf %86 : vector<16x128xf32> to vector<16x128xbf16>
      %c0_47 = arith.constant 0 : index
      %c0_48 = arith.constant 0 : index
      %c0_49 = arith.constant 0 : index
      %88 = vector.load %arg12[%c0_47, %c0_48, %c0_49] : memref<1x128x128xbf16, #tpu.memory_space<vmem>>, vector<1x128x128xbf16>
      %89 = vector.shape_cast %88 : vector<1x128x128xbf16> to vector<128x128xbf16>
      %cst_50 = arith.constant dense<0.000000e+00> : vector<16x128xf32>
      %90 = tpu.matmul %87, %89, %cst_50 {dimension_numbers = #tpu.dot_dimension_numbers<[1], [0], [0], [1], [0, 0, 1, 1], [], []>} : vector<16x128xbf16>, vector<128x128xbf16>, vector<16x128xf32> -> vector<16x128xf32>
      %c0_51 = arith.constant 0 : index
      %c0_52 = arith.constant 0 : index
      %c0_53 = arith.constant 0 : index
      %91 = vector.load %arg13[%c0_51, %c0_52, %c0_53] : memref<1x1x128xf32, #tpu.memory_space<vmem>>, vector<1x1x128xf32>
      %92 = vector.shape_cast %91 : vector<1x1x128xf32> to vector<1x128xf32>
      %93 = vector.broadcast %92 : vector<1x128xf32> to vector<16x128xf32>
      %94 = arith.addf %90, %93 : vector<16x128xf32>
      %cst_54 = arith.constant dense<0.000000e+00> : vector<128xf32>
      %95 = vector.multi_reduction <add>, %94, %cst_54 [0] : vector<16x128xf32> to vector<128xf32>
      %96 = vector.shape_cast %95 : vector<128xf32> to vector<1x128xf32>
      %cst_55 = arith.constant 1.600000e+01 : f32
      %97 = vector.broadcast %cst_55 : f32 to vector<1x128xf32>
      %98 = arith.divf %96, %97 : vector<1x128xf32>
      %99 = arith.mulf %94, %94 : vector<16x128xf32>
      %cst_56 = arith.constant dense<0.000000e+00> : vector<128xf32>
      %100 = vector.multi_reduction <add>, %99, %cst_56 [0] : vector<16x128xf32> to vector<128xf32>
      %101 = vector.shape_cast %100 : vector<128xf32> to vector<1x128xf32>
      %cst_57 = arith.constant 1.600000e+01 : f32
      %102 = vector.broadcast %cst_57 : f32 to vector<1x128xf32>
      %103 = arith.divf %101, %102 : vector<1x128xf32>
      %104 = arith.mulf %98, %98 : vector<1x128xf32>
      %105 = arith.subf %103, %104 : vector<1x128xf32>
      %cst_58 = arith.constant 0.000000e+00 : f32
      %106 = vector.broadcast %cst_58 : f32 to vector<1x128xf32>
      %107 = arith.maximumf %105, %106 : vector<1x128xf32>
      %108 = vector.broadcast %98 : vector<1x128xf32> to vector<16x128xf32>
      %109 = arith.subf %94, %108 : vector<16x128xf32>
      %cst_59 = arith.constant 9.99999974E-6 : f32
      %110 = vector.broadcast %cst_59 : f32 to vector<1x128xf32>
      %111 = arith.addf %107, %110 : vector<1x128xf32>
      %112 = math.rsqrt %111 : vector<1x128xf32>
      %113 = vector.broadcast %112 : vector<1x128xf32> to vector<16x128xf32>
      %114 = arith.mulf %109, %113 : vector<16x128xf32>
      %c0_60 = arith.constant 0 : index
      %c0_61 = arith.constant 0 : index
      %c0_62 = arith.constant 0 : index
      %115 = vector.load %arg14[%c0_60, %c0_61, %c0_62] : memref<1x1x128xf32, #tpu.memory_space<vmem>>, vector<1x1x128xf32>
      %116 = vector.shape_cast %115 : vector<1x1x128xf32> to vector<1x128xf32>
      %117 = vector.broadcast %116 : vector<1x128xf32> to vector<16x128xf32>
      %118 = arith.mulf %114, %117 : vector<16x128xf32>
      %c0_63 = arith.constant 0 : index
      %c0_64 = arith.constant 0 : index
      %c0_65 = arith.constant 0 : index
      %119 = vector.load %arg15[%c0_63, %c0_64, %c0_65] : memref<1x1x128xf32, #tpu.memory_space<vmem>>, vector<1x1x128xf32>
      %120 = vector.shape_cast %119 : vector<1x1x128xf32> to vector<1x128xf32>
      %121 = vector.broadcast %120 : vector<1x128xf32> to vector<16x128xf32>
      %122 = arith.addf %118, %121 : vector<16x128xf32>
      %c1_i32 = arith.constant 1 : i32
      %123 = arith.cmpi slt, %arg0, %c1_i32 : i32
      %124 = arith.extui %123 : i1 to i32
      %125 = arith.sitofp %124 : i32 to f32
      %cst_66 = arith.constant 0.000000e+00 : f32
      %126 = vector.broadcast %cst_66 : f32 to vector<16x128xf32>
      %127 = arith.maximumf %122, %126 : vector<16x128xf32>
      %128 = vector.broadcast %125 : f32 to vector<16x128xf32>
      %129 = arith.mulf %128, %127 : vector<16x128xf32>
      %cst_67 = arith.constant 1.000000e+00 : f32
      %130 = arith.subf %cst_67, %125 : f32
      %131 = vector.broadcast %130 : f32 to vector<16x128xf32>
      %132 = arith.mulf %131, %122 : vector<16x128xf32>
      %133 = arith.addf %129, %132 : vector<16x128xf32>
      %c0_68 = arith.constant 0 : index
      %c0_69 = arith.constant 0 : index
      %134 = vector.load %arg16[%c0_68, %c0_69] : memref<16x128xf32, #tpu.memory_space<vmem>>, vector<16x128xf32>
      tpu.vector_store %arg16[%c0_68, %c0_69], %133 {strides = array<i32>} : memref<16x128xf32, #tpu.memory_space<vmem>>, vector<16x128xf32>,
    } else {
    }
    return
  }
  func.func @transform_0(%arg0: i32, %arg1: i32) -> i32 {
    %c0_i32 = arith.constant 0 : i32
    %c0_i32_0 = arith.constant 0 : i32
    return %c0_i32 : i32
  }
  func.func @transform_1(%arg0: i32, %arg1: i32) -> (i32, i32) {
    %c0_i32 = arith.constant 0 : i32
    %c0_i32_0 = arith.constant 0 : i32
    %c0_i32_1 = arith.constant 0 : i32
    return %c0_i32, %c0_i32_0 : i32, i32
  }
  func.func @transform_2(%arg0: i32, %arg1: i32) -> (i32, i32) {
    %c0_i32 = arith.constant 0 : i32
    %c0_i32_0 = arith.constant 0 : i32
    return %arg1, %c0_i32 : i32, i32
  }
  func.func @transform_3(%arg0: i32, %arg1: i32) -> (i32, i32) {
    %c0_i32 = arith.constant 0 : i32
    %c0_i32_0 = arith.constant 0 : i32
    return %c0_i32, %arg1 : i32, i32
  }
  func.func @transform_4(%arg0: i32, %arg1: i32) -> (i32, i32) {
    %c0_i32 = arith.constant 0 : i32
    %c0_i32_0 = arith.constant 0 : i32
    return %arg1, %c0_i32 : i32, i32
  }
  func.func @transform_5(%arg0: i32, %arg1: i32) -> (i32, i32, i32) {
    %c0_i32 = arith.constant 0 : i32
    %c0_i32_0 = arith.constant 0 : i32
    %c0_i32_1 = arith.constant 0 : i32
    return %arg0, %c0_i32, %c0_i32_0 : i32, i32, i32
  }
  func.func @transform_6(%arg0: i32, %arg1: i32) -> (i32, i32, i32) {
    %c0_i32 = arith.constant 0 : i32
    %c0_i32_0 = arith.constant 0 : i32
    %c0_i32_1 = arith.constant 0 : i32
    return %arg0, %c0_i32, %c0_i32_0 : i32, i32, i32
  }
  func.func @transform_7(%arg0: i32, %arg1: i32) -> (i32, i32, i32) {
    %c0_i32 = arith.constant 0 : i32
    %c0_i32_0 = arith.constant 0 : i32
    %c0_i32_1 = arith.constant 0 : i32
    return %arg0, %c0_i32, %c0_i32_0 : i32, i32, i32
  }
  func.func @transform_8(%arg0: i32, %arg1: i32) -> (i32, i32, i32) {
    %c0_i32 = arith.constant 0 : i32
    %c0_i32_0 = arith.constant 0 : i32
    %c0_i32_1 = arith.constant 0 : i32
    return %arg0, %c0_i32, %c0_i32_0 : i32, i32, i32
  }
  func.func @transform_9(%arg0: i32, %arg1: i32) -> (i32, i32, i32) {
    %c0_i32 = arith.constant 0 : i32
    %c0_i32_0 = arith.constant 0 : i32
    %c0_i32_1 = arith.constant 0 : i32
    return %arg0, %c0_i32, %c0_i32_0 : i32, i32, i32
  }
  func.func @transform_10(%arg0: i32, %arg1: i32) -> (i32, i32, i32) {
    %c0_i32 = arith.constant 0 : i32
    %c0_i32_0 = arith.constant 0 : i32
    %c0_i32_1 = arith.constant 0 : i32
    return %arg0, %c0_i32, %c0_i32_0 : i32, i32, i32
  }
  func.func @transform_11(%arg0: i32, %arg1: i32) -> (i32, i32, i32) {
    %c0_i32 = arith.constant 0 : i32
    %c0_i32_0 = arith.constant 0 : i32
    %c0_i32_1 = arith.constant 0 : i32
    return %arg0, %c0_i32, %c0_i32_0 : i32, i32, i32
  }
  func.func @transform_12(%arg0: i32, %arg1: i32) -> (i32, i32, i32) {
    %c0_i32 = arith.constant 0 : i32
    %c0_i32_0 = arith.constant 0 : i32
    %c0_i32_1 = arith.constant 0 : i32
    return %arg0, %c0_i32, %c0_i32_0 : i32, i32, i32
  }
  func.func @transform_13(%arg0: i32, %arg1: i32) -> (i32, i32, i32) {
    %c0_i32 = arith.constant 0 : i32
    %c0_i32_0 = arith.constant 0 : i32
    %c0_i32_1 = arith.constant 0 : i32
    return %arg0, %c0_i32, %c0_i32_0 : i32, i32, i32
  }
  func.func @transform_14(%arg0: i32, %arg1: i32) -> (i32, i32) {
    %c0_i32 = arith.constant 0 : i32
    %c0_i32_0 = arith.constant 0 : i32
    %c0_i32_1 = arith.constant 0 : i32
    return %c0_i32, %c0_i32_0 : i32, i32
  }
}

</mosaic_0001>

<llo_original>
// kernel: tpu_custom_call.1
$region0: #{tpu_custom_call.1}
  #allocation0 [shape = 'u32[]', space=smem, size = 0x4, offset = 0x4, fixed_abs, tag = 'smem constant byte address 0x4 - core index']
  #allocation1 [shape = 'u32[144,128]{1,0:T(1,128)}', space=vmem, size = 0x12000, scoped, tag = 'internal scratch']
  #allocation2 [shape = 'bf16[16,128]{1,0:T(16,128)(2,1)}', space=vmem, size = 0x1000, scoped, tag = 'scratch operand']
  #allocation3 [shape = 'f32[16,128]{1,0:T(8,128)}', space=vmem, size = 0x2000, scoped, tag = 'scratch operand']
  %s0 = inlined_call_operand.hbm [shape: f32[2], index: 0, kind: input, shape index: {}]
  %s1 = inlined_call_operand.hbm [shape: f32[16,128], index: 1, kind: input, shape index: {}]
  %s2 = inlined_call_operand.vmem [shape: s32[128,1], index: 2, kind: input, shape index: {}]
  %s3 = inlined_call_operand.hbm [shape: s32[1,128], index: 3, kind: input, shape index: {}]
  %s4 = inlined_call_operand.vmem [shape: f32[128,1], index: 4, kind: input, shape index: {}]
  %s5 = inlined_call_operand.vmem [shape: f32[2,1,128], index: 5, kind: input, shape index: {}]
  %s6 = inlined_call_operand.vmem [shape: bf16[2,128,128], index: 6, kind: input, shape index: {}]
  %s7 = inlined_call_operand.vmem [shape: f32[2,1,128], index: 7, kind: input, shape index: {}]
  %s8 = inlined_call_operand.vmem [shape: f32[2,1,128], index: 8, kind: input, shape index: {}]
  %s9 = inlined_call_operand.vmem [shape: f32[2,1,128], index: 9, kind: input, shape index: {}]
  %s10 = inlined_call_operand.vmem [shape: bf16[2,128,128], index: 10, kind: input, shape index: {}]
  %s11 = inlined_call_operand.vmem [shape: f32[2,1,128], index: 11, kind: input, shape index: {}]
  %s12 = inlined_call_operand.vmem [shape: f32[2,1,128], index: 12, kind: input, shape index: {}]
  %s13 = inlined_call_operand.vmem [shape: f32[2,1,128], index: 13, kind: input, shape index: {}]
  %s14 = inlined_call_operand.hbm [shape: f32[16,128], index: 14, kind: output, shape index: {}]
  %s15 = sld [smem:[#allocation0]]
  $region113: #{tpu_custom_call.1} parent=0
    _
  %s17 = ssub.s32 1, %s15
  %s18 = scalar_select 0, %s17, %s15
  $region1: #{tpu_custom_call.1} parent=0
    #allocation4 [shape = 'u8[512]{0}', space=smem, size = 0x200, scoped, tag = 'input window, operand 0, single buffered']
    #allocation5 [shape = 's32[2]{0}', space=sflag, size = 0x8, scoped, tag = 'scoped memory for tpu_custom_call.1']
    #allocation6 [shape = 's32[2]{0}', space=sflag, size = 0x8, scoped, tag = 'scoped memory for tpu_custom_call.1']
    #allocation7 [shape = 's32[2]{0}', space=sflag, size = 0x8, scoped, tag = 'scoped memory for tpu_custom_call.1']
    #allocation8 [shape = 'u8[8192]{0}', space=vmem, size = 0x2000, scoped, tag = 'input window, operand 1, single buffered']
    #allocation9 [shape = 'u8[512]{0}', space=vmem, size = 0x400, scoped, tag = 'input window, operand 3, single buffered']
    #allocation10 [shape = 's32[1]{0}', space=sflag, size = 0x4, scoped, tag = 'scoped memory for tpu_custom_call.1']
    #allocation11 [shape = 'u8[8192]{0}', space=vmem, size = 0x2000, scoped, tag = 'output window, operand 0, single buffered']
    %19 = vsyncpa [#allocation7], 0
    %20 = vsyncpa [#allocation5], 0
    %21 = vsyncpa [#allocation10], 0
    %22 = vsyncpa [#allocation6], 0
    loop: start=0, step=1, limit=4
    $region2: #{tpu_custom_call.1} parent=1 // loop_pre_header
      _
    $region3: #{tpu_custom_call.1} parent=1 // loop_header
      %s24 = sphi 0, %s28
      %p25 = scmp.ge.s32.totalorder %s24, 4
      %s31 = sphi 0, %s43
      %s32 = sphi 0, %s39
      %s33 = sphi 0, %s31
      %s34 = sphi 0, %s32
      %s35 = sphi 0, %s33
      %s36 = sphi 0, %s34
      %s44 = sphi 0, %s44
      %s46 = sphi 0, %s44
      %s47 = sphi 0, %s46
      %s61 = sphi 0, %s47
      %s65 = sphi 0, %s65
      %s67 = sphi 0, %s65
      %s68 = sphi 0, %s67
      %s82 = sphi 0, %s68
      %s88 = sphi 0, %s90
      %s91 = sphi 0, %s88
      %s92 = sphi 0, %s91
      %s108 = sphi 0, %s92
      %s114 = sphi 0, %s116
      %s117 = sphi 0, %s114
      %s118 = sphi 0, %s117
      %s134 = sphi 0, %s118
      %s140 = sphi 0, %s142
      %s143 = sphi 0, %s140
      %s144 = sphi 0, %s143
      %s160 = sphi 0, %s144
      %s166 = sphi 0, %s168
      %s169 = sphi 0, %s166
      %s170 = sphi 0, %s169
      %s186 = sphi 0, %s170
      %s192 = sphi 0, %s194
      %s195 = sphi 0, %s192
      %s196 = sphi 0, %s195
      %s212 = sphi 0, %s196
      %s218 = sphi 0, %s220
      %s221 = sphi 0, %s218
      %s222 = sphi 0, %s221
      %s238 = sphi 0, %s222
      %s244 = sphi 0, %s246
      %s247 = sphi 0, %s244
      %s248 = sphi 0, %s247
      %s264 = sphi 0, %s248
      %s270 = sphi 0, %s272
      %s273 = sphi 0, %s270
      %s274 = sphi 0, %s273
      %s290 = sphi 0, %s274
      %s296 = sphi 0, %s298
      %s299 = sphi 0, %s296
      %s300 = sphi 0, %s299
      %s316 = sphi 0, %s300
      %s322 = sphi 0, %s324
      %s325 = sphi 0, %s322
      %s326 = sphi 0, %s325
      %s342 = sphi 0, %s326
      %s348 = sphi 0, %s350
      %s351 = sphi 0, %s348
      %s352 = sphi 0, %s351
      %s368 = sphi 0, %s352
      %s374 = sphi 0, %s376
      %s377 = sphi 0, %s374
      %s378 = sphi 0, %s377
      %s394 = sphi 0, %s378
      %s398 = sphi 0, %s398
      %s400 = sphi 0, %s398
      %s401 = sphi 0, %s400
      %s415 = sphi 0, %s401
    $region4: #{tpu_custom_call.1} parent=1 // loop_header_branch
      %27 = sbr.rel (%p25) target = $region8
    $region5: #{tpu_custom_call.1} parent=1 // loop_body
      %s29 = ssub.s32 %s24, 1
      %s30 = ssub.s32 %s24, 2
      %s37 = sadd.s32 1, %s32
      %p38 = scmp.ge.s32.totalorder %s37, 1
      %s39 = scalar_select %p38, 0, %s37
      %s40 = sadd.s32 1, %s31
      %s41 = scalar_select %p38, %s40, %s31
      %p42 = scmp.ge.s32.totalorder %s41, 2
      %s43 = scalar_select %p42, 0, %s41
      %s45 = sadd.s32 %s44, 1
      %p48 = scmp.eq.s32.totalorder %s24, 1
      %p49 = scmp.ne.s32.totalorder %s44, %s46
      %p50 = scmp.eq.s32.totalorder %s24, 0
      %p51 = por %p49, %p50
      %p52 = scmp.ne.s32.totalorder %s44, %s46
      %p53 = scmp.eq.s32.totalorder %s29, 1
      %p54 = por %p52, %p53
      %p55 = scmp.ne.s32.totalorder %s46, %s47
      %p56 = scmp.eq.s32.totalorder %s29, 0
      %p57 = por %p55, %p56
      %p58 = scmp.ne.s32.totalorder %s46, %s47
      %p59 = scmp.eq.s32.totalorder %s30, 1
      %p60 = por %p58, %p59
      %p62 = scmp.ne.s32.totalorder %s47, %s61
      %p63 = scmp.eq.s32.totalorder %s30, 0
      %p64 = por %p62, %p63
      %s66 = sadd.s32 %s65, 1
      %p69 = scmp.eq.s32.totalorder %s24, 1
      %p70 = scmp.ne.s32.totalorder %s65, %s67
      %p71 = scmp.eq.s32.totalorder %s24, 0
      %p72 = por %p70, %p71
      %p73 = scmp.ne.s32.totalorder %s65, %s67
      %p74 = scmp.eq.s32.totalorder %s29, 1
      %p75 = por %p73, %p74
      %p76 = scmp.ne.s32.totalorder %s67, %s68
      %p77 = scmp.eq.s32.totalorder %s29, 0
      %p78 = por %p76, %p77
      %p79 = scmp.ne.s32.totalorder %s67, %s68
      %p80 = scmp.eq.s32.totalorder %s30, 1
      %p81 = por %p79, %p80
      %p83 = scmp.ne.s32.totalorder %s68, %s82
      %p84 = scmp.eq.s32.totalorder %s30, 0
      %p85 = por %p83, %p84
      %s86 = ssub.s32 %s32, %s39
      %p87 = scmp.eq.s32.totalorder %s86, 0
      %s89 = sadd.s32 %s88, 1
      %s90 = scalar_select %p87, %s88, %s89
      %p93 = pneg %p87
      %p94 = scmp.eq.s32.totalorder %s24, 1
      %p95 = por %p93, %p94
      %p96 = scmp.ne.s32.totalorder %s88, %s91
      %p97 = scmp.eq.s32.totalorder %s24, 0
      %p98 = por %p96, %p97
      %p99 = scmp.ne.s32.totalorder %s88, %s91
      %p100 = scmp.eq.s32.totalorder %s29, 1
      %p101 = por %p99, %p100
      %p102 = scmp.ne.s32.totalorder %s91, %s92
      %p103 = scmp.eq.s32.totalorder %s29, 0
      %p104 = por %p102, %p103
      %p105 = scmp.ne.s32.totalorder %s91, %s92
      %p106 = scmp.eq.s32.totalorder %s30, 1
      %p107 = por %p105, %p106
      %p109 = scmp.ne.s32.totalorder %s92, %s108
      %p110 = scmp.eq.s32.totalorder %s30, 0
      %p111 = por %p109, %p110
      %s112 = ssub.s32 %s32, %s39
      %p113 = scmp.eq.s32.totalorder %s112, 0
      %s115 = sadd.s32 %s114, 1
      %s116 = scalar_select %p113, %s114, %s115
      %p119 = pneg %p113
      %p120 = scmp.eq.s32.totalorder %s24, 1
      %p121 = por %p119, %p120
      %p122 = scmp.ne.s32.totalorder %s114, %s117
      %p123 = scmp.eq.s32.totalorder %s24, 0
      %p124 = por %p122, %p123
      %p125 = scmp.ne.s32.totalorder %s114, %s117
      %p126 = scmp.eq.s32.totalorder %s29, 1
      %p127 = por %p125, %p126
      %p128 = scmp.ne.s32.totalorder %s117, %s118
      %p129 = scmp.eq.s32.totalorder %s29, 0
      %p130 = por %p128, %p129
      %p131 = scmp.ne.s32.totalorder %s117, %s118
      %p132 = scmp.eq.s32.totalorder %s30, 1
      %p133 = por %p131, %p132
      %p135 = scmp.ne.s32.totalorder %s118, %s134
      %p136 = scmp.eq.s32.totalorder %s30, 0
      %p137 = por %p135, %p136
      %s138 = ssub.s32 %s32, %s39
      %p139 = scmp.eq.s32.totalorder %s138, 0
      %s141 = sadd.s32 %s140, 1
      %s142 = scalar_select %p139, %s140, %s141
      %p145 = pneg %p139
      %p146 = scmp.eq.s32.totalorder %s24, 1
      %p147 = por %p145, %p146
      %p148 = scmp.ne.s32.totalorder %s140, %s143
      %p149 = scmp.eq.s32.totalorder %s24, 0
      %p150 = por %p148, %p149
      %p151 = scmp.ne.s32.totalorder %s140, %s143
      %p152 = scmp.eq.s32.totalorder %s29, 1
      %p153 = por %p151, %p152
      %p154 = scmp.ne.s32.totalorder %s143, %s144
      %p155 = scmp.eq.s32.totalorder %s29, 0
      %p156 = por %p154, %p155
      %p157 = scmp.ne.s32.totalorder %s143, %s144
      %p158 = scmp.eq.s32.totalorder %s30, 1
      %p159 = por %p157, %p158
      %p161 = scmp.ne.s32.totalorder %s144, %s160
      %p162 = scmp.eq.s32.totalorder %s30, 0
      %p163 = por %p161, %p162
      %s164 = ssub.s32 %s31, %s43
      %p165 = scmp.eq.s32.totalorder %s164, 0
      %s167 = sadd.s32 %s166, 1
      %s168 = scalar_select %p165, %s166, %s167
      %p171 = pneg %p165
      %p172 = scmp.eq.s32.totalorder %s24, 1
      %p173 = por %p171, %p172
      %p174 = scmp.ne.s32.totalorder %s166, %s169
      %p175 = scmp.eq.s32.totalorder %s24, 0
      %p176 = por %p174, %p175
      %p177 = scmp.ne.s32.totalorder %s166, %s169
      %p178 = scmp.eq.s32.totalorder %s29, 1
      %p179 = por %p177, %p178
      %p180 = scmp.ne.s32.totalorder %s169, %s170
      %p181 = scmp.eq.s32.totalorder %s29, 0
      %p182 = por %p180, %p181
      %p183 = scmp.ne.s32.totalorder %s169, %s170
      %p184 = scmp.eq.s32.totalorder %s30, 1
      %p185 = por %p183, %p184
      %p187 = scmp.ne.s32.totalorder %s170, %s186
      %p188 = scmp.eq.s32.totalorder %s30, 0
      %p189 = por %p187, %p188
      %s190 = ssub.s32 %s31, %s43
      %p191 = scmp.eq.s32.totalorder %s190, 0
      %s193 = sadd.s32 %s192, 1
      %s194 = scalar_select %p191, %s192, %s193
      %p197 = pneg %p191
      %p198 = scmp.eq.s32.totalorder %s24, 1
      %p199 = por %p197, %p198
      %p200 = scmp.ne.s32.totalorder %s192, %s195
      %p201 = scmp.eq.s32.totalorder %s24, 0
      %p202 = por %p200, %p201
      %p203 = scmp.ne.s32.totalorder %s192, %s195
      %p204 = scmp.eq.s32.totalorder %s29, 1
      %p205 = por %p203, %p204
      %p206 = scmp.ne.s32.totalorder %s195, %s196
      %p207 = scmp.eq.s32.totalorder %s29, 0
      %p208 = por %p206, %p207
      %p209 = scmp.ne.s32.totalorder %s195, %s196
      %p210 = scmp.eq.s32.totalorder %s30, 1
      %p211 = por %p209, %p210
      %p213 = scmp.ne.s32.totalorder %s196, %s212
      %p214 = scmp.eq.s32.totalorder %s30, 0
      %p215 = por %p213, %p214
      %s216 = ssub.s32 %s31, %s43
      %p217 = scmp.eq.s32.totalorder %s216, 0
      %s219 = sadd.s32 %s218, 1
      %s220 = scalar_select %p217, %s218, %s219
      %p223 = pneg %p217
      %p224 = scmp.eq.s32.totalorder %s24, 1
      %p225 = por %p223, %p224
      %p226 = scmp.ne.s32.totalorder %s218, %s221
      %p227 = scmp.eq.s32.totalorder %s24, 0
      %p228 = por %p226, %p227
      %p229 = scmp.ne.s32.totalorder %s218, %s221
      %p230 = scmp.eq.s32.totalorder %s29, 1
      %p231 = por %p229, %p230
      %p232 = scmp.ne.s32.totalorder %s221, %s222
      %p233 = scmp.eq.s32.totalorder %s29, 0
      %p234 = por %p232, %p233
      %p235 = scmp.ne.s32.totalorder %s221, %s222
      %p236 = scmp.eq.s32.totalorder %s30, 1
      %p237 = por %p235, %p236
      %p239 = scmp.ne.s32.totalorder %s222, %s238
      %p240 = scmp.eq.s32.totalorder %s30, 0
      %p241 = por %p239, %p240
      %s242 = ssub.s32 %s31, %s43
      %p243 = scmp.eq.s32.totalorder %s242, 0
      %s245 = sadd.s32 %s244, 1
      %s246 = scalar_select %p243, %s244, %s245
      %p249 = pneg %p243
      %p250 = scmp.eq.s32.totalorder %s24, 1
      %p251 = por %p249, %p250
      %p252 = scmp.ne.s32.totalorder %s244, %s247
      %p253 = scmp.eq.s32.totalorder %s24, 0
      %p254 = por %p252, %p253
      %p255 = scmp.ne.s32.totalorder %s244, %s247
      %p256 = scmp.eq.s32.totalorder %s29, 1
      %p257 = por %p255, %p256
      %p258 = scmp.ne.s32.totalorder %s247, %s248
      %p259 = scmp.eq.s32.totalorder %s29, 0
      %p260 = por %p258, %p259
      %p261 = scmp.ne.s32.totalorder %s247, %s248
      %p262 = scmp.eq.s32.totalorder %s30, 1
      %p263 = por %p261, %p262
      %p265 = scmp.ne.s32.totalorder %s248, %s264
      %p266 = scmp.eq.s32.totalorder %s30, 0
      %p267 = por %p265, %p266
      %s268 = ssub.s32 %s31, %s43
      %p269 = scmp.eq.s32.totalorder %s268, 0
      %s271 = sadd.s32 %s270, 1
      %s272 = scalar_select %p269, %s270, %s271
      %p275 = pneg %p269
      %p276 = scmp.eq.s32.totalorder %s24, 1
      %p277 = por %p275, %p276
      %p278 = scmp.ne.s32.totalorder %s270, %s273
      %p279 = scmp.eq.s32.totalorder %s24, 0
      %p280 = por %p278, %p279
      %p281 = scmp.ne.s32.totalorder %s270, %s273
      %p282 = scmp.eq.s32.totalorder %s29, 1
      %p283 = por %p281, %p282
      %p284 = scmp.ne.s32.totalorder %s273, %s274
      %p285 = scmp.eq.s32.totalorder %s29, 0
      %p286 = por %p284, %p285
      %p287 = scmp.ne.s32.totalorder %s273, %s274
      %p288 = scmp.eq.s32.totalorder %s30, 1
      %p289 = por %p287, %p288
      %p291 = scmp.ne.s32.totalorder %s274, %s290
      %p292 = scmp.eq.s32.totalorder %s30, 0
      %p293 = por %p291, %p292
      %s294 = ssub.s32 %s31, %s43
      %p295 = scmp.eq.s32.totalorder %s294, 0
      %s297 = sadd.s32 %s296, 1
      %s298 = scalar_select %p295, %s296, %s297
      %p301 = pneg %p295
      %p302 = scmp.eq.s32.totalorder %s24, 1
      %p303 = por %p301, %p302
      %p304 = scmp.ne.s32.totalorder %s296, %s299
      %p305 = scmp.eq.s32.totalorder %s24, 0
      %p306 = por %p304, %p305
      %p307 = scmp.ne.s32.totalorder %s296, %s299
      %p308 = scmp.eq.s32.totalorder %s29, 1
      %p309 = por %p307, %p308
      %p310 = scmp.ne.s32.totalorder %s299, %s300
      %p311 = scmp.eq.s32.totalorder %s29, 0
      %p312 = por %p310, %p311
      %p313 = scmp.ne.s32.totalorder %s299, %s300
      %p314 = scmp.eq.s32.totalorder %s30, 1
      %p315 = por %p313, %p314
      %p317 = scmp.ne.s32.totalorder %s300, %s316
      %p318 = scmp.eq.s32.totalorder %s30, 0
      %p319 = por %p317, %p318
      %s320 = ssub.s32 %s31, %s43
      %p321 = scmp.eq.s32.totalorder %s320, 0
      %s323 = sadd.s32 %s322, 1
      %s324 = scalar_select %p321, %s322, %s323
      %p327 = pneg %p321
      %p328 = scmp.eq.s32.totalorder %s24, 1
      %p329 = por %p327, %p328
      %p330 = scmp.ne.s32.totalorder %s322, %s325
      %p331 = scmp.eq.s32.totalorder %s24, 0
      %p332 = por %p330, %p331
      %p333 = scmp.ne.s32.totalorder %s322, %s325
      %p334 = scmp.eq.s32.totalorder %s29, 1
      %p335 = por %p333, %p334
      %p336 = scmp.ne.s32.totalorder %s325, %s326
      %p337 = scmp.eq.s32.totalorder %s29, 0
      %p338 = por %p336, %p337
      %p339 = scmp.ne.s32.totalorder %s325, %s326
      %p340 = scmp.eq.s32.totalorder %s30, 1
      %p341 = por %p339, %p340
      %p343 = scmp.ne.s32.totalorder %s326, %s342
      %p344 = scmp.eq.s32.totalorder %s30, 0
      %p345 = por %p343, %p344
      %s346 = ssub.s32 %s31, %s43
      %p347 = scmp.eq.s32.totalorder %s346, 0
      %s349 = sadd.s32 %s348, 1
      %s350 = scalar_select %p347, %s348, %s349
      %p353 = pneg %p347
      %p354 = scmp.eq.s32.totalorder %s24, 1
      %p355 = por %p353, %p354
      %p356 = scmp.ne.s32.totalorder %s348, %s351
      %p357 = scmp.eq.s32.totalorder %s24, 0
      %p358 = por %p356, %p357
      %p359 = scmp.ne.s32.totalorder %s348, %s351
      %p360 = scmp.eq.s32.totalorder %s29, 1
      %p361 = por %p359, %p360
      %p362 = scmp.ne.s32.totalorder %s351, %s352
      %p363 = scmp.eq.s32.totalorder %s29, 0
      %p364 = por %p362, %p363
      %p365 = scmp.ne.s32.totalorder %s351, %s352
      %p366 = scmp.eq.s32.totalorder %s30, 1
      %p367 = por %p365, %p366
      %p369 = scmp.ne.s32.totalorder %s352, %s368
      %p370 = scmp.eq.s32.totalorder %s30, 0
      %p371 = por %p369, %p370
      %s372 = ssub.s32 %s31, %s43
      %p373 = scmp.eq.s32.totalorder %s372, 0
      %s375 = sadd.s32 %s374, 1
      %s376 = scalar_select %p373, %s374, %s375
      %p379 = pneg %p373
      %p380 = scmp.eq.s32.totalorder %s24, 1
      %p381 = por %p379, %p380
      %p382 = scmp.ne.s32.totalorder %s374, %s377
      %p383 = scmp.eq.s32.totalorder %s24, 0
      %p384 = por %p382, %p383
      %p385 = scmp.ne.s32.totalorder %s374, %s377
      %p386 = scmp.eq.s32.totalorder %s29, 1
      %p387 = por %p385, %p386
      %p388 = scmp.ne.s32.totalorder %s377, %s378
      %p389 = scmp.eq.s32.totalorder %s29, 0
      %p390 = por %p388, %p389
      %p391 = scmp.ne.s32.totalorder %s377, %s378
      %p392 = scmp.eq.s32.totalorder %s30, 1
      %p393 = por %p391, %p392
      %p395 = scmp.ne.s32.totalorder %s378, %s394
      %p396 = scmp.eq.s32.totalorder %s30, 0
      %p397 = por %p395, %p396
      %s399 = sadd.s32 %s398, 1
      %p402 = scmp.eq.s32.totalorder %s24, 1
      %p403 = scmp.ne.s32.totalorder %s398, %s400
      %p404 = scmp.eq.s32.totalorder %s24, 0
      %p405 = por %p403, %p404
      %p406 = scmp.ne.s32.totalorder %s398, %s400
      %p407 = scmp.eq.s32.totalorder %s29, 1
      %p408 = por %p406, %p407
      %p409 = scmp.ne.s32.totalorder %s400, %s401
      %p410 = scmp.eq.s32.totalorder %s29, 0
      %p411 = por %p409, %p410
      %p412 = scmp.ne.s32.totalorder %s400, %s401
      %p413 = scmp.eq.s32.totalorder %s30, 1
      %p414 = por %p412, %p413
      %p416 = scmp.ne.s32.totalorder %s401, %s415
      %p417 = scmp.eq.s32.totalorder %s30, 0
      %p418 = por %p416, %p417
      %p419 = scmp.le.s32.totalorder 1, %s24
      %p420 = scmp.lt.s32.totalorder %s24, 3
      %p421 = pnand %p419, %p420
      %p422 = pneg %p421
      // Predicated region
      $region9: #{tpu_custom_call.1} parent=5 // pred_check
        _
      $region10: #{tpu_custom_call.1} parent=5 // pred_check_branch
        %424 = sbr.rel (%p421) target = $region12
      $region11: #{tpu_custom_call.1} parent=5 // pred_region
        %s425 = ssub.s32 %s24, 1
        // Predicated region
        $region13: #{tpu_custom_call.1} parent=11 // pred_check
          %p426 = pneg %p57
        $region14: #{tpu_custom_call.1} parent=11 // pred_check_branch
          %428 = sbr.rel (%p426) target = $region16
        $region15: #{tpu_custom_call.1} parent=11 // pred_region
          %s430 = ssub.s32 16, 16
          %431 = vsyncadd [#allocation7], %s430
          %434 = dma.hbm_to_smem %s0, 16, [#allocation4], [#allocation7]
        $region16: #{tpu_custom_call.1} parent=11 // pred_fallthru
          _
        // Predicated region
        $region17: #{tpu_custom_call.1} parent=11 // pred_check
          %p435 = pneg %p78
        $region18: #{tpu_custom_call.1} parent=11 // pred_check_branch
          %437 = sbr.rel (%p435) target = $region20
        $region19: #{tpu_custom_call.1} parent=11 // pred_region
          %s439 = ssub.s32 256, 256
          %440 = vsyncadd [#allocation5], %s439
          %s441 = sshll.u32 [#allocation8], 4
          %s442 = int_to_ptr.vmem [resolvable:$true] %s441
          %447 = dma.hbm_to_vmem [thread:$0]  %s1, 256, %s442, [#allocation5], 128, 128, 8
        $region20: #{tpu_custom_call.1} parent=11 // pred_fallthru
          _
        // Predicated region
        $region21: #{tpu_custom_call.1} parent=11 // pred_check
          %p448 = pneg %p104
        $region22: #{tpu_custom_call.1} parent=11 // pred_check_branch
          %450 = sbr.rel (%p448) target = $region24
        $region23: #{tpu_custom_call.1} parent=11 // pred_region
          %s451 = smul.u32 16, %s34
          %p452 = scmp.lt.s32.totalorder %s451, 15
          %s453 = scalar_select %p452, %s451, 15
          %s454 = smul.addr %s453, 8
          %s455 = scalar_lea.vmem %s2, %s454
          %s456 = smul.u32 16, %s34
        $region24: #{tpu_custom_call.1} parent=11 // pred_fallthru
          _
        // Predicated region
        $region25: #{tpu_custom_call.1} parent=11 // pred_check
          %p457 = pneg %p130
        $region26: #{tpu_custom_call.1} parent=11 // pred_check_branch
          %459 = sbr.rel (%p457) target = $region28
        $region27: #{tpu_custom_call.1} parent=11 // pred_region
          %s461 = ssub.s32 16, 16
          %462 = vsyncadd [#allocation10], %s461
          %s463 = smul.addr %s34, 16
          %s464 = scalar_lea.hbm %s3, %s463
          %s466 = sshll.u32 [#allocation9], 4
          %s467 = int_to_ptr.vmem [resolvable:$true] %s466
          %469 = dma.hbm_to_vmem [thread:$0]  %s464, 16, %s467, [#allocation10]
        $region28: #{tpu_custom_call.1} parent=11 // pred_fallthru
          _
        // Predicated region
        $region29: #{tpu_custom_call.1} parent=11 // pred_check
          %p470 = pneg %p156
        $region30: #{tpu_custom_call.1} parent=11 // pred_check_branch
          %472 = sbr.rel (%p470) target = $region32
        $region31: #{tpu_custom_call.1} parent=11 // pred_region
          %s473 = smul.u32 16, %s34
          %p474 = scmp.lt.s32.totalorder %s473, 15
          %s475 = scalar_select %p474, %s473, 15
          %s476 = smul.addr %s475, 8
          %s477 = scalar_lea.vmem %s4, %s476
          %s478 = smul.u32 16, %s34
        $region32: #{tpu_custom_call.1} parent=11 // pred_fallthru
          _
      $region12: #{tpu_custom_call.1} parent=5 // pred_fallthru
        _
      %p479 = scmp.lt.s32.totalorder %s24, 2
      // Predicated region
      $region33: #{tpu_custom_call.1} parent=5 // pred_check
        %p480 = pneg %p479
      $region34: #{tpu_custom_call.1} parent=5 // pred_check_branch
        %482 = sbr.rel (%p480) target = $region36
      $region35: #{tpu_custom_call.1} parent=5 // pred_region
        // Predicated region
        $region37: #{tpu_custom_call.1} parent=35 // pred_check
          %p483 = pneg %p176
        $region38: #{tpu_custom_call.1} parent=35 // pred_check_branch
          %485 = sbr.rel (%p483) target = $region40
        $region39: #{tpu_custom_call.1} parent=35 // pred_region
          %p486 = scmp.lt.s32.totalorder %s31, 1
          %s487 = scalar_select %p486, %s31, 1
          %s488 = scalar_lea.vmem %s5, %s487
        $region40: #{tpu_custom_call.1} parent=35 // pred_fallthru
          _
        // Predicated region
        $region41: #{tpu_custom_call.1} parent=35 // pred_check
          %p489 = pneg %p202
        $region42: #{tpu_custom_call.1} parent=35 // pred_check_branch
          %491 = sbr.rel (%p489) target = $region44
        $region43: #{tpu_custom_call.1} parent=35 // pred_region
          %p492 = scmp.lt.s32.totalorder %s31, 1
          %s493 = scalar_select %p492, %s31, 1
          %s494 = smul.addr %s493, 16
          %s495 = smul.addr %s494, 4
          %s496 = scalar_lea.vmem %s6, %s495
        $region44: #{tpu_custom_call.1} parent=35 // pred_fallthru
          _
        // Predicated region
        $region45: #{tpu_custom_call.1} parent=35 // pred_check
          %p497 = pneg %p228
        $region46: #{tpu_custom_call.1} parent=35 // pred_check_branch
          %499 = sbr.rel (%p497) target = $region48
        $region47: #{tpu_custom_call.1} parent=35 // pred_region
          %p500 = scmp.lt.s32.totalorder %s31, 1
          %s501 = scalar_select %p500, %s31, 1
          %s502 = scalar_lea.vmem %s7, %s501
        $region48: #{tpu_custom_call.1} parent=35 // pred_fallthru
          _
        // Predicated region
        $region49: #{tpu_custom_call.1} parent=35 // pred_check
          %p503 = pneg %p254
        $region50: #{tpu_custom_call.1} parent=35 // pred_check_branch
          %505 = sbr.rel (%p503) target = $region52
        $region51: #{tpu_custom_call.1} parent=35 // pred_region
          %p506 = scmp.lt.s32.totalorder %s31, 1
          %s507 = scalar_select %p506, %s31, 1
          %s508 = scalar_lea.vmem %s8, %s507
        $region52: #{tpu_custom_call.1} parent=35 // pred_fallthru
          _
        // Predicated region
        $region53: #{tpu_custom_call.1} parent=35 // pred_check
          %p509 = pneg %p280
        $region54: #{tpu_custom_call.1} parent=35 // pred_check_branch
          %511 = sbr.rel (%p509) target = $region56
        $region55: #{tpu_custom_call.1} parent=35 // pred_region
          %p512 = scmp.lt.s32.totalorder %s31, 1
          %s513 = scalar_select %p512, %s31, 1
          %s514 = scalar_lea.vmem %s9, %s513
        $region56: #{tpu_custom_call.1} parent=35 // pred_fallthru
          _
        // Predicated region
        $region57: #{tpu_custom_call.1} parent=35 // pred_check
          %p515 = pneg %p306
        $region58: #{tpu_custom_call.1} parent=35 // pred_check_branch
          %517 = sbr.rel (%p515) target = $region60
        $region59: #{tpu_custom_call.1} parent=35 // pred_region
          %p518 = scmp.lt.s32.totalorder %s31, 1
          %s519 = scalar_select %p518, %s31, 1
          %s520 = smul.addr %s519, 16
          %s521 = smul.addr %s520, 4
          %s522 = scalar_lea.vmem %s10, %s521
        $region60: #{tpu_custom_call.1} parent=35 // pred_fallthru
          _
        // Predicated region
        $region61: #{tpu_custom_call.1} parent=35 // pred_check
          %p523 = pneg %p332
        $region62: #{tpu_custom_call.1} parent=35 // pred_check_branch
          %525 = sbr.rel (%p523) target = $region64
        $region63: #{tpu_custom_call.1} parent=35 // pred_region
          %p526 = scmp.lt.s32.totalorder %s31, 1
          %s527 = scalar_select %p526, %s31, 1
          %s528 = scalar_lea.vmem %s11, %s527
        $region64: #{tpu_custom_call.1} parent=35 // pred_fallthru
          _
        // Predicated region
        $region65: #{tpu_custom_call.1} parent=35 // pred_check
          %p529 = pneg %p358
        $region66: #{tpu_custom_call.1} parent=35 // pred_check_branch
          %531 = sbr.rel (%p529) target = $region68
        $region67: #{tpu_custom_call.1} parent=35 // pred_region
          %p532 = scmp.lt.s32.totalorder %s31, 1
          %s533 = scalar_select %p532, %s31, 1
          %s534 = scalar_lea.vmem %s12, %s533
        $region68: #{tpu_custom_call.1} parent=35 // pred_fallthru
          _
        // Predicated region
        $region69: #{tpu_custom_call.1} parent=35 // pred_check
          %p535 = pneg %p384
        $region70: #{tpu_custom_call.1} parent=35 // pred_check_branch
          %537 = sbr.rel (%p535) target = $region72
        $region71: #{tpu_custom_call.1} parent=35 // pred_region
          %p538 = scmp.lt.s32.totalorder %s31, 1
          %s539 = scalar_select %p538, %s31, 1
          %s540 = scalar_lea.vmem %s13, %s539
        $region72: #{tpu_custom_call.1} parent=35 // pred_fallthru
          _
      $region36: #{tpu_custom_call.1} parent=5 // pred_fallthru
        _
      %p541 = scmp.le.s32.totalorder 1, %s24
      %p542 = scmp.lt.s32.totalorder %s24, 3
      %p543 = pnand %p541, %p542
      %p544 = pneg %p543
      // Predicated region
      $region73: #{tpu_custom_call.1} parent=5 // pred_check
        _
      $region74: #{tpu_custom_call.1} parent=5 // pred_check_branch
        %546 = sbr.rel (%p543) target = $region76
      $region75: #{tpu_custom_call.1} parent=5 // pred_region
        %s547 = ssub.s32 %s24, 1
        // Predicated region
        $region77: #{tpu_custom_call.1} parent=75 // pred_check
          %p548 = pneg %p57
        $region78: #{tpu_custom_call.1} parent=75 // pred_check_branch
          %550 = sbr.rel (%p548) target = $region80
        $region79: #{tpu_custom_call.1} parent=75 // pred_region
          %551 = dma.done [#allocation7], 16
        $region80: #{tpu_custom_call.1} parent=75 // pred_fallthru
          _
        // Predicated region
        $region81: #{tpu_custom_call.1} parent=75 // pred_check
          %p552 = pneg %p78
        $region82: #{tpu_custom_call.1} parent=75 // pred_check_branch
          %554 = sbr.rel (%p552) target = $region84
        $region83: #{tpu_custom_call.1} parent=75 // pred_region
          %555 = dma.done [#allocation5], 256
        $region84: #{tpu_custom_call.1} parent=75 // pred_fallthru
          _
        // Predicated region
        $region85: #{tpu_custom_call.1} parent=75 // pred_check
          %p556 = pneg %p130
        $region86: #{tpu_custom_call.1} parent=75 // pred_check_branch
          %558 = sbr.rel (%p556) target = $region88
        $region87: #{tpu_custom_call.1} parent=75 // pred_region
          %559 = dma.done [#allocation10], 16
        $region88: #{tpu_custom_call.1} parent=75 // pred_fallthru
          _
        %560 = sfence
        %p561 = pneg %p57
        %p562 = pneg %p54
        %p563 = pneg %p78
        %p564 = pneg %p75
        %s565 = smul.u32 16, %s34
        %p566 = scmp.lt.s32.totalorder %s565, 15
        %s567 = scalar_select %p566, %s565, 15
        %s568 = smul.addr %s567, 8
        %s569 = scalar_lea.vmem %s2, %s568
        %p570 = pneg %p104
        %p571 = pneg %p101
        %p572 = pneg %p130
        %p573 = pneg %p127
        %s574 = smul.u32 16, %s34
        %p575 = scmp.lt.s32.totalorder %s574, 15
        %s576 = scalar_select %p575, %s574, 15
        %s577 = smul.addr %s576, 8
        %s578 = scalar_lea.vmem %s4, %s577
        %p579 = pneg %p156
        %p580 = pneg %p153
        %p581 = scmp.lt.s32.totalorder %s33, 1
        %s582 = scalar_select %p581, %s33, 1
        %s583 = scalar_lea.vmem %s5, %s582
        %p584 = pneg %p182
        %p585 = pneg %p179
        %p586 = scmp.lt.s32.totalorder %s33, 1
        %s587 = scalar_select %p586, %s33, 1
        %s588 = smul.addr %s587, 16
        %s589 = smul.addr %s588, 4
        %s590 = scalar_lea.vmem %s6, %s589
        %p591 = pneg %p208
        %p592 = pneg %p205
        %p593 = scmp.lt.s32.totalorder %s33, 1
        %s594 = scalar_select %p593, %s33, 1
        %s595 = scalar_lea.vmem %s7, %s594
        %p596 = pneg %p234
        %p597 = pneg %p231
        %p598 = scmp.lt.s32.totalorder %s33, 1
        %s599 = scalar_select %p598, %s33, 1
        %s600 = scalar_lea.vmem %s8, %s599
        %p601 = pneg %p260
        %p602 = pneg %p257
        %p603 = scmp.lt.s32.totalorder %s33, 1
        %s604 = scalar_select %p603, %s33, 1
        %s605 = scalar_lea.vmem %s9, %s604
        %p606 = pneg %p286
        %p607 = pneg %p283
        %p608 = scmp.lt.s32.totalorder %s33, 1
        %s609 = scalar_select %p608, %s33, 1
        %s610 = smul.addr %s609, 16
        %s611 = smul.addr %s610, 4
        %s612 = scalar_lea.vmem %s10, %s611
        %p613 = pneg %p312
        %p614 = pneg %p309
        %p615 = scmp.lt.s32.totalorder %s33, 1
        %s616 = scalar_select %p615, %s33, 1
        %s617 = scalar_lea.vmem %s11, %s616
        %p618 = pneg %p338
        %p619 = pneg %p335
        %p620 = scmp.lt.s32.totalorder %s33, 1
        %s621 = scalar_select %p620, %s33, 1
        %s622 = scalar_lea.vmem %s12, %s621
        %p623 = pneg %p364
        %p624 = pneg %p361
        %p625 = scmp.lt.s32.totalorder %s33, 1
        %s626 = scalar_select %p625, %s33, 1
        %s627 = scalar_lea.vmem %s13, %s626
        %p628 = pneg %p390
        %p629 = pneg %p387
        %p630 = pneg %p411
        %p631 = pneg %p408
        %s632 = smul.u32 16, %s34
        %p633 = scmp.lt.s32.totalorder %s632, 15
        %s634 = scalar_select %p633, %s632, 15
        %s635 = smul.addr %s634, 8
        %s636 = scalar_lea.vmem %s2, %s635
        %s637 = smul.u32 16, %s34
        %s638 = smul.u32 16, %s34
        %p639 = scmp.lt.s32.totalorder %s638, 15
        %s640 = scalar_select %p639, %s638, 15
        %s641 = smul.addr %s640, 8
        %s642 = scalar_lea.vmem %s4, %s641
        %s643 = smul.u32 16, %s34
        %p644 = scmp.lt.s32.totalorder %s33, 1
        %s645 = scalar_select %p644, %s33, 1
        %s646 = scalar_lea.vmem %s5, %s645
        %p647 = scmp.lt.s32.totalorder %s33, 1
        %s648 = scalar_select %p647, %s33, 1
        %s649 = smul.addr %s648, 16
        %s650 = smul.addr %s649, 4
        %s651 = scalar_lea.vmem %s6, %s650
        %p652 = scmp.lt.s32.totalorder %s33, 1
        %s653 = scalar_select %p652, %s33, 1
        %s654 = scalar_lea.vmem %s7, %s653
        %p655 = scmp.lt.s32.totalorder %s33, 1
        %s656 = scalar_select %p655, %s33, 1
        %s657 = scalar_lea.vmem %s8, %s656
        %p658 = scmp.lt.s32.totalorder %s33, 1
        %s659 = scalar_select %p658, %s33, 1
        %s660 = scalar_lea.vmem %s9, %s659
        %p661 = scmp.lt.s32.totalorder %s33, 1
        %s662 = scalar_select %p661, %s33, 1
        %s663 = smul.addr %s662, 16
        %s664 = smul.addr %s663, 4
        %s665 = scalar_lea.vmem %s10, %s664
        %p666 = scmp.lt.s32.totalorder %s33, 1
        %s667 = scalar_select %p666, %s33, 1
        %s668 = scalar_lea.vmem %s11, %s667
        %p669 = scmp.lt.s32.totalorder %s33, 1
        %s670 = scalar_select %p669, %s33, 1
        %s671 = scalar_lea.vmem %s12, %s670
        %p672 = scmp.lt.s32.totalorder %s33, 1
        %s673 = scalar_select %p672, %s33, 1
        %s674 = scalar_lea.vmem %s13, %s673
        %p676 = scmp.eq.s32.totalorder %s33, 0
        %p677 = scmp.eq.s32.totalorder %s34, 0
        %p678 = pnand %p676, %p677
        %p679 = pneg %p678
        // Predicated region
        $region89: #{tpu_custom_call.1} parent=75 // pred_check
          _
        $region90: #{tpu_custom_call.1} parent=75 // pred_check_branch
          %681 = sbr.rel (%p678) target = $region92
        $region91: #{tpu_custom_call.1} parent=75 // pred_region
          %v682 = vld [vmem:[#allocation8] sm:$0xff]
          %v683 = vld [vmem:[#allocation8 + $0x8] sm:$0xff]
          %684 = vst [vmem:[#allocation11] sm:$0xff] %v682
          %685 = vst [vmem:[#allocation11 + $0x8] sm:$0xff] %v683
        $region92: #{tpu_custom_call.1} parent=75 // pred_fallthru
          _
        // Predicated region
        $region93: #{tpu_custom_call.1} parent=75 // pred_check
          %p686 = pneg %p677
        $region94: #{tpu_custom_call.1} parent=75 // pred_check_branch
          %688 = sbr.rel (%p686) target = $region96
        $region95: #{tpu_custom_call.1} parent=75 // pred_region
          %v689 = vld [vmem:[#allocation11] sm:$0xff]
          %v690 = vld [vmem:[#allocation11 + $0x8] sm:$0xff]
          %v691 = vpack.c.bf16 %v690, %v689
          %692 = vst [vmem:[#allocation2] sm:$0xff] %v691
          %693 = vst [vmem:[#allocation3] sm:$0xff] 0.0
          %694 = vst [vmem:[#allocation3 + $0x8] sm:$0xff] 0.0
        $region96: #{tpu_custom_call.1} parent=75 // pred_fallthru
          _
        %v695 = vlaneseq
        %v696 = vand.u32 %v695, 127
        %v697 = vld [vmem:[%s636] sm:$0xff]
        %v698 = vld [vmem:[%s636 + $0x8] sm:$0xff]
        %v699 = vld [vmem:[%s636 + $0x10] sm:$0xff]
        %v700 = vld [vmem:[%s636 + $0x18] sm:$0xff]
        %v701 = vld [vmem:[%s636 + $0x20] sm:$0xff]
        %v702 = vld [vmem:[%s636 + $0x28] sm:$0xff]
        %v703 = vld [vmem:[%s636 + $0x30] sm:$0xff]
        %v704 = vld [vmem:[%s636 + $0x38] sm:$0xff]
        %v705 = vld [vmem:[%s636 + $0x40] sm:$0xff]
        %v706 = vld [vmem:[%s636 + $0x48] sm:$0xff]
        %v707 = vld [vmem:[%s636 + $0x50] sm:$0xff]
        %v708 = vld [vmem:[%s636 + $0x58] sm:$0xff]
        %v709 = vld [vmem:[%s636 + $0x60] sm:$0xff]
        %v710 = vld [vmem:[%s636 + $0x68] sm:$0xff]
        %v711 = vld [vmem:[%s636 + $0x70] sm:$0xff]
        %v712 = vld [vmem:[%s636 + $0x78] sm:$0xff]
        %713 = vset.pattern.permute.xlu0 0
        %714 = vperm.xlu0 %713, %v697
        %v715 = vpop.permute.xlu0 %714
        %716 = vset.pattern.permute.xlu0 0
        %717 = vperm.xlu0 %716, %v698
        %v718 = vpop.permute.xlu0 %717
        %719 = vset.pattern.permute.xlu0 0
        %720 = vperm.xlu0 %719, %v699
        %v721 = vpop.permute.xlu0 %720
        %722 = vset.pattern.permute.xlu0 0
        %723 = vperm.xlu0 %722, %v700
        %v724 = vpop.permute.xlu0 %723
        %725 = vset.pattern.permute.xlu0 0
        %726 = vperm.xlu0 %725, %v701
        %v727 = vpop.permute.xlu0 %726
        %728 = vset.pattern.permute.xlu0 0
        %729 = vperm.xlu0 %728, %v702
        %v730 = vpop.permute.xlu0 %729
        %731 = vset.pattern.permute.xlu0 0
        %732 = vperm.xlu0 %731, %v703
        %v733 = vpop.permute.xlu0 %732
        %734 = vset.pattern.permute.xlu0 0
        %735 = vperm.xlu0 %734, %v704
        %v736 = vpop.permute.xlu0 %735
        %737 = vset.pattern.permute.xlu0 0
        %738 = vperm.xlu0 %737, %v705
        %v739 = vpop.permute.xlu0 %738
        %740 = vset.pattern.permute.xlu0 0
        %741 = vperm.xlu0 %740, %v706
        %v742 = vpop.permute.xlu0 %741
        %743 = vset.pattern.permute.xlu0 0
        %744 = vperm.xlu0 %743, %v707
        %v745 = vpop.permute.xlu0 %744
        %746 = vset.pattern.permute.xlu0 0
        %747 = vperm.xlu0 %746, %v708
        %v748 = vpop.permute.xlu0 %747
        %749 = vset.pattern.permute.xlu0 0
        %750 = vperm.xlu0 %749, %v709
        %v751 = vpop.permute.xlu0 %750
        %752 = vset.pattern.permute.xlu0 0
        %753 = vperm.xlu0 %752, %v710
        %v754 = vpop.permute.xlu0 %753
        %755 = vset.pattern.permute.xlu0 0
        %756 = vperm.xlu0 %755, %v711
        %v757 = vpop.permute.xlu0 %756
        %758 = vset.pattern.permute.xlu0 0
        %759 = vperm.xlu0 %758, %v712
        %v760 = vpop.permute.xlu0 %759
        %vm761 = vcmp.eq.s32.totalorder %v696, %v715
        %vm762 = vcmp.eq.s32.totalorder %v696, %v718
        %vm763 = vcmp.eq.s32.totalorder %v696, %v721
        %vm764 = vcmp.eq.s32.totalorder %v696, %v724
        %vm765 = vcmp.eq.s32.totalorder %v696, %v727
        %vm766 = vcmp.eq.s32.totalorder %v696, %v730
        %vm767 = vcmp.eq.s32.totalorder %v696, %v733
        %vm768 = vcmp.eq.s32.totalorder %v696, %v736
        %vm769 = vcmp.eq.s32.totalorder %v696, %v739
        %vm770 = vcmp.eq.s32.totalorder %v696, %v742
        %vm771 = vcmp.eq.s32.totalorder %v696, %v745
        %vm772 = vcmp.eq.s32.totalorder %v696, %v748
        %vm773 = vcmp.eq.s32.totalorder %v696, %v751
        %vm774 = vcmp.eq.s32.totalorder %v696, %v754
        %vm775 = vcmp.eq.s32.totalorder %v696, %v757
        %vm776 = vcmp.eq.s32.totalorder %v696, %v760
        %v777 = vsel %vm761, 1, 0
        %v778 = vsel %vm762, 1, 0
        %v779 = vsel %vm763, 1, 0
        %v780 = vsel %vm764, 1, 0
        %v781 = vsel %vm765, 1, 0
        %v782 = vsel %vm766, 1, 0
        %v783 = vsel %vm767, 1, 0
        %v784 = vsel %vm768, 1, 0
        %v785 = vsel %vm769, 1, 0
        %v786 = vsel %vm770, 1, 0
        %v787 = vsel %vm771, 1, 0
        %v788 = vsel %vm772, 1, 0
        %v789 = vsel %vm773, 1, 0
        %v790 = vsel %vm774, 1, 0
        %v791 = vsel %vm775, 1, 0
        %v792 = vsel %vm776, 1, 0
        %v793 = vcvt.s32.f32 %v777
        %v794 = vcvt.s32.f32 %v778
        %v795 = vcvt.s32.f32 %v779
        %v796 = vcvt.s32.f32 %v780
        %v797 = vcvt.s32.f32 %v781
        %v798 = vcvt.s32.f32 %v782
        %v799 = vcvt.s32.f32 %v783
        %v800 = vcvt.s32.f32 %v784
        %v801 = vcvt.s32.f32 %v785
        %v802 = vcvt.s32.f32 %v786
        %v803 = vcvt.s32.f32 %v787
        %v804 = vcvt.s32.f32 %v788
        %v805 = vcvt.s32.f32 %v789
        %v806 = vcvt.s32.f32 %v790
        %v807 = vcvt.s32.f32 %v791
        %v808 = vcvt.s32.f32 %v792
        %v809 = vpack.c.bf16 %v794, %v793
        %v810 = vpack.c.bf16 %v796, %v795
        %v811 = vpack.c.bf16 %v798, %v797
        %v812 = vpack.c.bf16 %v800, %v799
        %v813 = vpack.c.bf16 %v802, %v801
        %v814 = vpack.c.bf16 %v804, %v803
        %v815 = vpack.c.bf16 %v806, %v805
        %v816 = vpack.c.bf16 %v808, %v807
        %v817 = vlaneseq
        %v818 = vshrl.u32 %v817, 7
        %v819 = vadd.s32 %v818, 8
        %v820 = vld [vmem:[#allocation9] sm:$0x1]
        %v821 = vlaneseq
        %v822 = vshrl.u32 %v821, 7
        %v823 = vsub.s32 0, %v822
        %v824 = vrot.slane %v820, %v823
        %vm825 = vcmp.eq.s32.totalorder %v818, %v824
        %vm826 = vcmp.eq.s32.totalorder %v819, %v824
        %v827 = vsel %vm825, 1, 0
        %v828 = vsel %vm826, 1, 0
        %v829 = vcvt.s32.f32 %v827
        %v830 = vcvt.s32.f32 %v828
        %v831 = vpack.c.bf16 %v830, %v829
        %v832 = vld [vmem:[%s642] sm:$0xff]
        %v833 = vld [vmem:[%s642 + $0x8] sm:$0xff]
        %v834 = vld [vmem:[%s642 + $0x10] sm:$0xff]
        %v835 = vld [vmem:[%s642 + $0x18] sm:$0xff]
        %v836 = vld [vmem:[%s642 + $0x20] sm:$0xff]
        %v837 = vld [vmem:[%s642 + $0x28] sm:$0xff]
        %v838 = vld [vmem:[%s642 + $0x30] sm:$0xff]
        %v839 = vld [vmem:[%s642 + $0x38] sm:$0xff]
        %v840 = vld [vmem:[%s642 + $0x40] sm:$0xff]
        %v841 = vld [vmem:[%s642 + $0x48] sm:$0xff]
        %v842 = vld [vmem:[%s642 + $0x50] sm:$0xff]
        %v843 = vld [vmem:[%s642 + $0x58] sm:$0xff]
        %v844 = vld [vmem:[%s642 + $0x60] sm:$0xff]
        %v845 = vld [vmem:[%s642 + $0x68] sm:$0xff]
        %v846 = vld [vmem:[%s642 + $0x70] sm:$0xff]
        %v847 = vld [vmem:[%s642 + $0x78] sm:$0xff]
        %v848 = vld [vmem:[%s646] sm:$0x1]
        %850 = vset.pattern.permute.xlu0 0
        %851 = vperm.xlu0 %850, %v832
        %v852 = vpop.permute.xlu0 %851
        %855 = vset.pattern.permute.xlu0 0
        %856 = vperm.xlu0 %855, %v833
        %v857 = vpop.permute.xlu0 %856
        %860 = vset.pattern.permute.xlu0 0
        %861 = vperm.xlu0 %860, %v834
        %v862 = vpop.permute.xlu0 %861
        %865 = vset.pattern.permute.xlu0 0
        %866 = vperm.xlu0 %865, %v835
        %v867 = vpop.permute.xlu0 %866
        %870 = vset.pattern.permute.xlu0 0
        %871 = vperm.xlu0 %870, %v836
        %v872 = vpop.permute.xlu0 %871
        %875 = vset.pattern.permute.xlu0 0
        %876 = vperm.xlu0 %875, %v837
        %v877 = vpop.permute.xlu0 %876
        %880 = vset.pattern.permute.xlu0 0
        %881 = vperm.xlu0 %880, %v838
        %v882 = vpop.permute.xlu0 %881
        %885 = vset.pattern.permute.xlu0 0
        %886 = vperm.xlu0 %885, %v839
        %v887 = vpop.permute.xlu0 %886
        %890 = vset.pattern.permute.xlu0 0
        %891 = vperm.xlu0 %890, %v840
        %v892 = vpop.permute.xlu0 %891
        %895 = vset.pattern.permute.xlu0 0
        %896 = vperm.xlu0 %895, %v841
        %v897 = vpop.permute.xlu0 %896
        %900 = vset.pattern.permute.xlu0 0
        %901 = vperm.xlu0 %900, %v842
        %v902 = vpop.permute.xlu0 %901
        %905 = vset.pattern.permute.xlu0 0
        %906 = vperm.xlu0 %905, %v843
        %v907 = vpop.permute.xlu0 %906
        %910 = vset.pattern.permute.xlu0 0
        %911 = vperm.xlu0 %910, %v844
        %v912 = vpop.permute.xlu0 %911
        %915 = vset.pattern.permute.xlu0 0
        %916 = vperm.xlu0 %915, %v845
        %v917 = vpop.permute.xlu0 %916
        %920 = vset.pattern.permute.xlu0 0
        %921 = vperm.xlu0 %920, %v846
        %v922 = vpop.permute.xlu0 %921
        %925 = vset.pattern.permute.xlu0 0
        %926 = vperm.xlu0 %925, %v847
        %v927 = vpop.permute.xlu0 %926
        %v930 = vlaneseq
        %v931 = vshrl.u32 %v930, 7
        %v932 = vsub.s32 0, %v931
        %v933 = vrot.slane %v848, %v932
        %v935 = vmul.f32 %v852, %v933
        %v936 = vmul.f32 %v857, %v933
        %v937 = vmul.f32 %v862, %v933
        %v938 = vmul.f32 %v867, %v933
        %v939 = vmul.f32 %v872, %v933
        %v940 = vmul.f32 %v877, %v933
        %v941 = vmul.f32 %v882, %v933
        %v942 = vmul.f32 %v887, %v933
        %v943 = vmul.f32 %v892, %v933
        %v944 = vmul.f32 %v897, %v933
        %v945 = vmul.f32 %v902, %v933
        %v946 = vmul.f32 %v907, %v933
        %v947 = vmul.f32 %v912, %v933
        %v948 = vmul.f32 %v917, %v933
        %v949 = vmul.f32 %v922, %v933
        %v950 = vmul.f32 %v927, %v933
        %v951 = vld [vmem:[#allocation2] sm:$0xff]
        %vm952 = vcmask 130048
        %v954 = vsel %vm952, %v809, 0
        %v957 = vsel %vm952, %v810, 0
        %v960 = vsel %vm952, %v811, 0
        %v963 = vsel %vm952, %v812, 0
        %v966 = vsel %vm952, %v813, 0
        %v969 = vsel %vm952, %v814, 0
        %v972 = vsel %vm952, %v815, 0
        %v975 = vsel %vm952, %v816, 0
        %977 = vmatprep.subr.bf16.mxu0 0
        %978 = vmatpush1.bf16.msra.mxu0 %v951
        %979 = vmatprep.subr.bf16.mxu0 0
        %980 = vmatpush1.bf16.msra.mxu0 0
        %981 = vmatprep.subr.bf16.mxu0 0
        %982 = vmatpush1.bf16.msra.mxu0 0
        %983 = vmatprep.subr.bf16.mxu0 0
        %984 = vmatpush1.bf16.msra.mxu0 0
        %985 = vmatprep.subr.bf16.mxu0 0
        %986 = vmatpush1.bf16.msra.mxu0 0
        %987 = vmatprep.subr.bf16.mxu0 0
        %988 = vmatpush1.bf16.msra.mxu0 0
        %989 = vmatprep.subr.bf16.mxu0 0
        %990 = vmatpush1.bf16.msra.mxu0 0
        %991 = vmatprep.subr.bf16.mxu0 0
        %992 = vmatpush1.bf16.msra.mxu0 0
        %993 = vmatprep.subr.bf16.mxu0 0
        %994 = vmatpush1.bf16.msra.mxu0 0
        %995 = vmatprep.subr.bf16.mxu0 0
        %996 = vmatpush1.bf16.msra.mxu0 0
        %997 = vmatprep.subr.bf16.mxu0 0
        %998 = vmatpush1.bf16.msra.mxu0 0
        %999 = vmatprep.subr.bf16.mxu0 0
        %1000 = vmatpush1.bf16.msra.mxu0 0
        %1001 = vmatprep.subr.bf16.mxu0 0
        %1002 = vmatpush1.bf16.msra.mxu0 0
        %1003 = vmatprep.subr.bf16.mxu0 0
        %1004 = vmatpush1.bf16.msra.mxu0 0
        %1005 = vmatprep.subr.bf16.mxu0 0
        %1006 = vmatpush1.bf16.msra.mxu0 0
        %1007 = vmatprep.subr.bf16.mxu0 0
        %1008 = vmatpush1.bf16.msra.mxu0 0
        %1009 = vmatprep.mubr.bf16.mxu0 0
        %1010 = vmatmul.mubr.bf16.gmra.mrb[0].mxu0 %v954
        %v1011 = vpop.f32.mrb[0].mxu0
        %v1012 = vadd.f32 %v935, %v1011
        %v1013 = vpop.f32.mrb[0].mxu0
        %v1014 = vpop.f32.mrb[0].mxu0
        %v1015 = vadd.f32 %v936, %v1014
        %v1016 = vpop.f32.mrb[0].mxu0
        %1017 = vmatprep.mubr.bf16.mxu0 0
        %1018 = vmatmul.mubr.bf16.gmra.mrb[0].mxu0 %v957
        %v1019 = vpop.f32.mrb[0].mxu0
        %v1020 = vadd.f32 %v937, %v1019
        %v1021 = vpop.f32.mrb[0].mxu0
        %v1022 = vpop.f32.mrb[0].mxu0
        %v1023 = vadd.f32 %v938, %v1022
        %v1024 = vpop.f32.mrb[0].mxu0
        %1025 = vmatprep.mubr.bf16.mxu0 0
        %1026 = vmatmul.mubr.bf16.gmra.mrb[0].mxu0 %v960
        %v1027 = vpop.f32.mrb[0].mxu0
        %v1028 = vadd.f32 %v939, %v1027
        %v1029 = vpop.f32.mrb[0].mxu0
        %v1030 = vpop.f32.mrb[0].mxu0
        %v1031 = vadd.f32 %v940, %v1030
        %v1032 = vpop.f32.mrb[0].mxu0
        %1033 = vmatprep.mubr.bf16.mxu0 0
        %1034 = vmatmul.mubr.bf16.gmra.mrb[0].mxu0 %v963
        %v1035 = vpop.f32.mrb[0].mxu0
        %v1036 = vadd.f32 %v941, %v1035
        %v1037 = vpop.f32.mrb[0].mxu0
        %v1038 = vpop.f32.mrb[0].mxu0
        %v1039 = vadd.f32 %v942, %v1038
        %v1040 = vpop.f32.mrb[0].mxu0
        %1041 = vmatprep.mubr.bf16.mxu0 0
        %1042 = vmatmul.mubr.bf16.gmra.mrb[0].mxu0 %v966
        %v1043 = vpop.f32.mrb[0].mxu0
        %v1044 = vadd.f32 %v943, %v1043
        %v1045 = vpop.f32.mrb[0].mxu0
        %v1046 = vpop.f32.mrb[0].mxu0
        %v1047 = vadd.f32 %v944, %v1046
        %v1048 = vpop.f32.mrb[0].mxu0
        %1049 = vmatprep.mubr.bf16.mxu0 0
        %1050 = vmatmul.mubr.bf16.gmra.mrb[0].mxu0 %v969
        %v1051 = vpop.f32.mrb[0].mxu0
        %v1052 = vadd.f32 %v945, %v1051
        %v1053 = vpop.f32.mrb[0].mxu0
        %v1054 = vpop.f32.mrb[0].mxu0
        %v1055 = vadd.f32 %v946, %v1054
        %v1056 = vpop.f32.mrb[0].mxu0
        %1057 = vmatprep.mubr.bf16.mxu0 0
        %1058 = vmatmul.mubr.bf16.gmra.mrb[0].mxu0 %v972
        %v1059 = vpop.f32.mrb[0].mxu0
        %v1060 = vadd.f32 %v947, %v1059
        %v1061 = vpop.f32.mrb[0].mxu0
        %v1062 = vpop.f32.mrb[0].mxu0
        %v1063 = vadd.f32 %v948, %v1062
        %v1064 = vpop.f32.mrb[0].mxu0
        %1065 = vmatprep.mubr.bf16.mxu0 0
        %1066 = vmatmul.mubr.bf16.gmra.mrb[0].mxu0 %v975
        %v1067 = vpop.f32.mrb[0].mxu0
        %v1068 = vadd.f32 %v949, %v1067
        %v1069 = vpop.f32.mrb[0].mxu0
        %v1070 = vpop.f32.mrb[0].mxu0
        %v1071 = vadd.f32 %v950, %v1070
        %v1072 = vpop.f32.mrb[0].mxu0
        %1073 = vdwg.mxu0
        %v1074 = vmax.f32 %v1012, 0.0
        %v1075 = vmax.f32 %v1015, 0.0
        %v1076 = vmax.f32 %v1020, 0.0
        %v1077 = vmax.f32 %v1023, 0.0
        %v1078 = vmax.f32 %v1028, 0.0
        %v1079 = vmax.f32 %v1031, 0.0
        %v1080 = vmax.f32 %v1036, 0.0
        %v1081 = vmax.f32 %v1039, 0.0
        %v1082 = vmax.f32 %v1044, 0.0
        %v1083 = vmax.f32 %v1047, 0.0
        %v1084 = vmax.f32 %v1052, 0.0
        %v1085 = vmax.f32 %v1055, 0.0
        %v1086 = vmax.f32 %v1060, 0.0
        %v1087 = vmax.f32 %v1063, 0.0
        %v1088 = vmax.f32 %v1068, 0.0
        %v1089 = vmax.f32 %v1071, 0.0
        %v1090 = vld [vmem:[#allocation3] sm:$0xff]
        %v1091 = vld [vmem:[#allocation3 + $0x8] sm:$0xff]
        %v1092 = vpack.c.bf16 %v1075, %v1074
        %v1093 = vpack.c.bf16 %v1077, %v1076
        %v1094 = vpack.c.bf16 %v1079, %v1078
        %v1095 = vpack.c.bf16 %v1081, %v1080
        %v1096 = vpack.c.bf16 %v1083, %v1082
        %v1097 = vpack.c.bf16 %v1085, %v1084
        %v1098 = vpack.c.bf16 %v1087, %v1086
        %v1099 = vpack.c.bf16 %v1089, %v1088
        %1100 = vmatprep.subr.bf16.mxu0 0
        %1101 = vmatpush1.bf16.msra.mxu0 %v1092
        %1102 = vmatprep.subr.bf16.mxu0 0
        %1103 = vmatpush1.bf16.msra.mxu0 %v1093
        %1104 = vmatprep.subr.bf16.mxu0 0
        %1105 = vmatpush1.bf16.msra.mxu0 %v1094
        %1106 = vmatprep.subr.bf16.mxu0 0
        %1107 = vmatpush1.bf16.msra.mxu0 %v1095
        %1108 = vmatprep.subr.bf16.mxu0 0
        %1109 = vmatpush1.bf16.msra.mxu0 %v1096
        %1110 = vmatprep.subr.bf16.mxu0 0
        %1111 = vmatpush1.bf16.msra.mxu0 %v1097
        %1112 = vmatprep.subr.bf16.mxu0 0
        %1113 = vmatpush1.bf16.msra.mxu0 %v1098
        %1114 = vmatprep.subr.bf16.mxu0 0
        %1115 = vmatpush1.bf16.msra.mxu0 %v1099
        %1116 = vmatprep.subr.bf16.mxu0 0
        %1117 = vmatpush1.bf16.msra.mxu0 0
        %1118 = vmatprep.subr.bf16.mxu0 0
        %1119 = vmatpush1.bf16.msra.mxu0 0
        %1120 = vmatprep.subr.bf16.mxu0 0
        %1121 = vmatpush1.bf16.msra.mxu0 0
        %1122 = vmatprep.subr.bf16.mxu0 0
        %1123 = vmatpush1.bf16.msra.mxu0 0
        %1124 = vmatprep.subr.bf16.mxu0 0
        %1125 = vmatpush1.bf16.msra.mxu0 0
        %1126 = vmatprep.subr.bf16.mxu0 0
        %1127 = vmatpush1.bf16.msra.mxu0 0
        %1128 = vmatprep.subr.bf16.mxu0 0
        %1129 = vmatpush1.bf16.msra.mxu0 0
        %1130 = vmatprep.subr.bf16.mxu0 0
        %1131 = vmatpush1.bf16.msra.mxu0 0
        %1132 = vmatprep.mubr.bf16.mxu0 0
        %1133 = vmatmul.mubr.bf16.gmra.mrb[0].mxu0 %v831
        %v1134 = vpop.f32.mrb[0].mxu0
        %v1135 = vadd.f32 0.0, %v1134
        %v1136 = vpop.f32.mrb[0].mxu0
        %v1137 = vpop.f32.mrb[0].mxu0
        %v1138 = vadd.f32 0.0, %v1137
        %v1139 = vpop.f32.mrb[0].mxu0
        %1140 = vdwg.mxu0
        %v1141 = vadd.f32 %v1090, %v1135
        %v1142 = vadd.f32 %v1091, %v1138
        %1143 = vst [vmem:[#allocation3] sm:$0xff] %v1141
        %1144 = vst [vmem:[#allocation3 + $0x8] sm:$0xff] %v1142
        // Predicated region
        $region97: #{tpu_custom_call.1} parent=75 // pred_check
          %p1145 = pneg %p677
        $region98: #{tpu_custom_call.1} parent=75 // pred_check_branch
          %1147 = sbr.rel (%p1145) target = $region100
        $region99: #{tpu_custom_call.1} parent=75 // pred_region
          %s1148 = sld [smem:[#allocation4 + %s33]]
          %s1149 = sadd.f32 %s1148, 1.0
          %v1150 = vld [vmem:[#allocation11] sm:$0xff]
          %v1151 = vld [vmem:[#allocation11 + $0x8] sm:$0xff]
          %v1152 = vstv %s1149
          %v1153 = vmul.f32 %v1152, %v1150
          %v1154 = vmul.f32 %v1152, %v1151
          %v1155 = vld [vmem:[#allocation3] sm:$0xff]
          %v1156 = vld [vmem:[#allocation3 + $0x8] sm:$0xff]
          %v1157 = vadd.f32 %v1153, %v1155
          %v1158 = vadd.f32 %v1154, %v1156
          %v1159 = vpack.c.bf16 %v1158, %v1157
          %v1160 = vld [vmem:[%s651] sm:$0xf]
          %v1161 = vld [vmem:[%s651 + $0x4] sm:$0xf]
          %v1162 = vld [vmem:[%s651 + $0x8] sm:$0xf]
          %v1163 = vld [vmem:[%s651 + $0xc] sm:$0xf]
          %v1164 = vld [vmem:[%s651 + $0x10] sm:$0xf]
          %v1165 = vld [vmem:[%s651 + $0x14] sm:$0xf]
          %v1166 = vld [vmem:[%s651 + $0x18] sm:$0xf]
          %v1167 = vld [vmem:[%s651 + $0x1c] sm:$0xf]
          %v1168 = vld [vmem:[%s651 + $0x20] sm:$0xf]
          %v1169 = vld [vmem:[%s651 + $0x24] sm:$0xf]
          %v1170 = vld [vmem:[%s651 + $0x28] sm:$0xf]
          %v1171 = vld [vmem:[%s651 + $0x2c] sm:$0xf]
          %v1172 = vld [vmem:[%s651 + $0x30] sm:$0xf]
          %v1173 = vld [vmem:[%s651 + $0x34] sm:$0xf]
          %v1174 = vld [vmem:[%s651 + $0x38] sm:$0xf]
          %v1175 = vld [vmem:[%s651 + $0x3c] sm:$0xf]
          %v1176 = vld [vmem:[%s654] sm:$0x1]
          %v1178 = vlaneseq
          %v1179 = vshrl.u32 %v1178, 7
          %v1180 = vsub.s32 0, %v1179
          %v1181 = vrot.slane %v1176, %v1180
          %v1199 = vunpack.c.l.b16 %v1160
          %v1200 = vunpack.c.l.b16 %v1161
          %v1201 = vunpack.c.l.b16 %v1162
          %v1202 = vunpack.c.l.b16 %v1163
          %v1203 = vunpack.c.l.b16 %v1164
          %v1204 = vunpack.c.l.b16 %v1165
          %v1205 = vunpack.c.l.b16 %v1166
          %v1206 = vunpack.c.l.b16 %v1167
          %v1207 = vunpack.c.l.b16 %v1168
          %v1208 = vunpack.c.l.b16 %v1169
          %v1209 = vunpack.c.l.b16 %v1170
          %v1210 = vunpack.c.l.b16 %v1171
          %v1211 = vunpack.c.l.b16 %v1172
          %v1212 = vunpack.c.l.b16 %v1173
          %v1213 = vunpack.c.l.b16 %v1174
          %v1214 = vunpack.c.l.b16 %v1175
          %v1215 = vpack.c.b16 %v1200, %v1199
          %v1216 = vpack.c.b16 %v1202, %v1201
          %v1217 = vpack.c.b16 %v1204, %v1203
          %v1218 = vpack.c.b16 %v1206, %v1205
          %v1219 = vpack.c.b16 %v1208, %v1207
          %v1220 = vpack.c.b16 %v1210, %v1209
          %v1221 = vpack.c.b16 %v1212, %v1211
          %v1222 = vpack.c.b16 %v1214, %v1213
          %1231 = vmatprep.subr.bf16.mxu0 0
          %1232 = vmatpush1.bf16.msra.mxu0 %v1215
          %1233 = vmatprep.subr.bf16.mxu0 0
          %1234 = vmatpush1.bf16.msra.mxu0 %v1216
          %1235 = vmatprep.subr.bf16.mxu0 0
          %1236 = vmatpush1.bf16.msra.mxu0 %v1217
          %1237 = vmatprep.subr.bf16.mxu0 0
          %1238 = vmatpush1.bf16.msra.mxu0 %v1218
          %1239 = vmatprep.subr.bf16.mxu0 0
          %1240 = vmatpush1.bf16.msra.mxu0 %v1219
          %1241 = vmatprep.subr.bf16.mxu0 0
          %1242 = vmatpush1.bf16.msra.mxu0 %v1220
          %1243 = vmatprep.subr.bf16.mxu0 0
          %1244 = vmatpush1.bf16.msra.mxu0 %v1221
          %1245 = vmatprep.subr.bf16.mxu0 0
          %1246 = vmatpush1.bf16.msra.mxu0 %v1222
          %1247 = vmatprep.subr.bf16.mxu0 0
          %1248 = vmatpush1.bf16.msra.mxu0 0
          %1249 = vmatprep.subr.bf16.mxu0 0
          %1250 = vmatpush1.bf16.msra.mxu0 0
          %1251 = vmatprep.subr.bf16.mxu0 0
          %1252 = vmatpush1.bf16.msra.mxu0 0
          %1253 = vmatprep.subr.bf16.mxu0 0
          %1254 = vmatpush1.bf16.msra.mxu0 0
          %1255 = vmatprep.subr.bf16.mxu0 0
          %1256 = vmatpush1.bf16.msra.mxu0 0
          %1257 = vmatprep.subr.bf16.mxu0 0
          %1258 = vmatpush1.bf16.msra.mxu0 0
          %1259 = vmatprep.subr.bf16.mxu0 0
          %1260 = vmatpush1.bf16.msra.mxu0 0
          %1261 = vmatprep.subr.bf16.mxu0 0
          %1262 = vmatpush1.bf16.msra.mxu0 0
          %1263 = vmatprep.mubr.bf16.mxu0 0
          %1264 = vmatmul.mubr.bf16.gmra.mrb[0].mxu0 %v1159
          %v1265 = vpop.f32.mrb[0].mxu0
          %v1266 = vadd.f32 %v1181, %v1265
          %v1267 = vpop.f32.mrb[0].mxu0
          %v1268 = vpop.f32.mrb[0].mxu0
          %v1269 = vadd.f32 %v1181, %v1268
          %v1270 = vpop.f32.mrb[0].mxu0
          %1271 = vdwg.mxu0
          %v1272 = vadd.f32 %v1266, %v1269
          %v1273 = vrot.slane %v1272, 4
          %v1274 = vadd.f32 %v1272, %v1273
          %v1275 = vrot.slane %v1274, 2
          %v1276 = vadd.f32 %v1274, %v1275
          %v1277 = vrot.slane %v1276, 1
          %v1278 = vadd.f32 %v1276, %v1277
          %v1279 = vrcp.pop 16.0
          %v1280 = vmul.f32 %v1278, %v1279
          %v1281 = vmul.f32 %v1266, %v1266
          %v1282 = vmul.f32 %v1269, %v1269
          %v1283 = vadd.f32 %v1281, %v1282
          %v1284 = vrot.slane %v1283, 4
          %v1285 = vadd.f32 %v1283, %v1284
          %v1286 = vrot.slane %v1285, 2
          %v1287 = vadd.f32 %v1285, %v1286
          %v1288 = vrot.slane %v1287, 1
          %v1289 = vadd.f32 %v1287, %v1288
          %v1290 = vmul.f32 %v1289, %v1279
          %v1291 = vmul.f32 %v1280, %v1280
          %v1292 = vsub.f32 %v1290, %v1291
          %v1293 = vmax.f32 %v1292, 0.0
          %v1294 = vsub.f32 %v1266, %v1280
          %v1295 = vsub.f32 %v1269, %v1280
          %v1296 = vadd.f32 %v1293, 1e-05
          %v1297 = vrsqrt.pop %v1296
          %v1298 = vmul.f32 %v1294, %v1297
          %v1299 = vmul.f32 %v1295, %v1297
          %v1300 = vld [vmem:[%s657] sm:$0x1]
          %v1302 = vlaneseq
          %v1303 = vshrl.u32 %v1302, 7
          %v1304 = vsub.s32 0, %v1303
          %v1305 = vrot.slane %v1300, %v1304
          %v1307 = vmul.f32 %v1298, %v1305
          %v1308 = vmul.f32 %v1299, %v1305
          %v1309 = vld [vmem:[%s660] sm:$0x1]
          %v1311 = vlaneseq
          %v1312 = vshrl.u32 %v1311, 7
          %v1313 = vsub.s32 0, %v1312
          %v1314 = vrot.slane %v1309, %v1313
          %v1316 = vadd.f32 %v1307, %v1314
          %v1317 = vadd.f32 %v1308, %v1314
          %v1318 = vmax.f32 %v1316, 0.0
          %v1319 = vmax.f32 %v1317, 0.0
          %v1320 = vpack.c.bf16 %v1319, %v1318
          %v1321 = vld [vmem:[%s665] sm:$0xf]
          %v1322 = vld [vmem:[%s665 + $0x4] sm:$0xf]
          %v1323 = vld [vmem:[%s665 + $0x8] sm:$0xf]
          %v1324 = vld [vmem:[%s665 + $0xc] sm:$0xf]
          %v1325 = vld [vmem:[%s665 + $0x10] sm:$0xf]
          %v1326 = vld [vmem:[%s665 + $0x14] sm:$0xf]
          %v1327 = vld [vmem:[%s665 + $0x18] sm:$0xf]
          %v1328 = vld [vmem:[%s665 + $0x1c] sm:$0xf]
          %v1329 = vld [vmem:[%s665 + $0x20] sm:$0xf]
          %v1330 = vld [vmem:[%s665 + $0x24] sm:$0xf]
          %v1331 = vld [vmem:[%s665 + $0x28] sm:$0xf]
          %v1332 = vld [vmem:[%s665 + $0x2c] sm:$0xf]
          %v1333 = vld [vmem:[%s665 + $0x30] sm:$0xf]
          %v1334 = vld [vmem:[%s665 + $0x34] sm:$0xf]
          %v1335 = vld [vmem:[%s665 + $0x38] sm:$0xf]
          %v1336 = vld [vmem:[%s665 + $0x3c] sm:$0xf]
          %v1337 = vld [vmem:[%s668] sm:$0x1]
          %v1339 = vlaneseq
          %v1340 = vshrl.u32 %v1339, 7
          %v1341 = vsub.s32 0, %v1340
          %v1342 = vrot.slane %v1337, %v1341
          %v1360 = vunpack.c.l.b16 %v1321
          %v1361 = vunpack.c.l.b16 %v1322
          %v1362 = vunpack.c.l.b16 %v1323
          %v1363 = vunpack.c.l.b16 %v1324
          %v1364 = vunpack.c.l.b16 %v1325
          %v1365 = vunpack.c.l.b16 %v1326
          %v1366 = vunpack.c.l.b16 %v1327
          %v1367 = vunpack.c.l.b16 %v1328
          %v1368 = vunpack.c.l.b16 %v1329
          %v1369 = vunpack.c.l.b16 %v1330
          %v1370 = vunpack.c.l.b16 %v1331
          %v1371 = vunpack.c.l.b16 %v1332
          %v1372 = vunpack.c.l.b16 %v1333
          %v1373 = vunpack.c.l.b16 %v1334
          %v1374 = vunpack.c.l.b16 %v1335
          %v1375 = vunpack.c.l.b16 %v1336
          %v1376 = vpack.c.b16 %v1361, %v1360
          %v1377 = vpack.c.b16 %v1363, %v1362
          %v1378 = vpack.c.b16 %v1365, %v1364
          %v1379 = vpack.c.b16 %v1367, %v1366
          %v1380 = vpack.c.b16 %v1369, %v1368
          %v1381 = vpack.c.b16 %v1371, %v1370
          %v1382 = vpack.c.b16 %v1373, %v1372
          %v1383 = vpack.c.b16 %v1375, %v1374
          %1392 = vmatprep.subr.bf16.mxu0 0
          %1393 = vmatpush1.bf16.msra.mxu0 %v1376
          %1394 = vmatprep.subr.bf16.mxu0 0
          %1395 = vmatpush1.bf16.msra.mxu0 %v1377
          %1396 = vmatprep.subr.bf16.mxu0 0
          %1397 = vmatpush1.bf16.msra.mxu0 %v1378
          %1398 = vmatprep.subr.bf16.mxu0 0
          %1399 = vmatpush1.bf16.msra.mxu0 %v1379
          %1400 = vmatprep.subr.bf16.mxu0 0
          %1401 = vmatpush1.bf16.msra.mxu0 %v1380
          %1402 = vmatprep.subr.bf16.mxu0 0
          %1403 = vmatpush1.bf16.msra.mxu0 %v1381
          %1404 = vmatprep.subr.bf16.mxu0 0
          %1405 = vmatpush1.bf16.msra.mxu0 %v1382
          %1406 = vmatprep.subr.bf16.mxu0 0
          %1407 = vmatpush1.bf16.msra.mxu0 %v1383
          %1408 = vmatprep.subr.bf16.mxu0 0
          %1409 = vmatpush1.bf16.msra.mxu0 0
          %1410 = vmatprep.subr.bf16.mxu0 0
          %1411 = vmatpush1.bf16.msra.mxu0 0
          %1412 = vmatprep.subr.bf16.mxu0 0
          %1413 = vmatpush1.bf16.msra.mxu0 0
          %1414 = vmatprep.subr.bf16.mxu0 0
          %1415 = vmatpush1.bf16.msra.mxu0 0
          %1416 = vmatprep.subr.bf16.mxu0 0
          %1417 = vmatpush1.bf16.msra.mxu0 0
          %1418 = vmatprep.subr.bf16.mxu0 0
          %1419 = vmatpush1.bf16.msra.mxu0 0
          %1420 = vmatprep.subr.bf16.mxu0 0
          %1421 = vmatpush1.bf16.msra.mxu0 0
          %1422 = vmatprep.subr.bf16.mxu0 0
          %1423 = vmatpush1.bf16.msra.mxu0 0
          %1424 = vmatprep.mubr.bf16.mxu0 0
          %1425 = vmatmul.mubr.bf16.gmra.mrb[0].mxu0 %v1320
          %v1426 = vpop.f32.mrb[0].mxu0
          %v1427 = vadd.f32 %v1342, %v1426
          %v1428 = vpop.f32.mrb[0].mxu0
          %v1429 = vpop.f32.mrb[0].mxu0
          %v1430 = vadd.f32 %v1342, %v1429
          %v1431 = vpop.f32.mrb[0].mxu0
          %1432 = vdwg.mxu0
          %v1433 = vadd.f32 %v1427, %v1430
          %v1434 = vrot.slane %v1433, 4
          %v1435 = vadd.f32 %v1433, %v1434
          %v1436 = vrot.slane %v1435, 2
          %v1437 = vadd.f32 %v1435, %v1436
          %v1438 = vrot.slane %v1437, 1
          %v1439 = vadd.f32 %v1437, %v1438
          %v1440 = vmul.f32 %v1439, %v1279
          %v1441 = vmul.f32 %v1427, %v1427
          %v1442 = vmul.f32 %v1430, %v1430
          %v1443 = vadd.f32 %v1441, %v1442
          %v1444 = vrot.slane %v1443, 4
          %v1445 = vadd.f32 %v1443, %v1444
          %v1446 = vrot.slane %v1445, 2
          %v1447 = vadd.f32 %v1445, %v1446
          %v1448 = vrot.slane %v1447, 1
          %v1449 = vadd.f32 %v1447, %v1448
          %v1450 = vmul.f32 %v1449, %v1279
          %v1451 = vmul.f32 %v1440, %v1440
          %v1452 = vsub.f32 %v1450, %v1451
          %v1453 = vmax.f32 %v1452, 0.0
          %v1454 = vsub.f32 %v1427, %v1440
          %v1455 = vsub.f32 %v1430, %v1440
          %v1456 = vadd.f32 %v1453, 1e-05
          %v1457 = vrsqrt.pop %v1456
          %v1458 = vmul.f32 %v1454, %v1457
          %v1459 = vmul.f32 %v1455, %v1457
          %v1460 = vld [vmem:[%s671] sm:$0x1]
          %v1462 = vlaneseq
          %v1463 = vshrl.u32 %v1462, 7
          %v1464 = vsub.s32 0, %v1463
          %v1465 = vrot.slane %v1460, %v1464
          %v1467 = vmul.f32 %v1458, %v1465
          %v1468 = vmul.f32 %v1459, %v1465
          %v1469 = vld [vmem:[%s674] sm:$0x1]
          %v1471 = vlaneseq
          %v1472 = vshrl.u32 %v1471, 7
          %v1473 = vsub.s32 0, %v1472
          %v1474 = vrot.slane %v1469, %v1473
          %v1476 = vadd.f32 %v1467, %v1474
          %v1477 = vadd.f32 %v1468, %v1474
          %p1478 = scmp.lt.s32.totalorder %s33, 1
          %s1479 = scalar_select %p1478, 1, 0
          %s1480 = scvt.s32.f32 %s1479
          %v1481 = vmax.f32 %v1476, 0.0
          %v1482 = vmax.f32 %v1477, 0.0
          %v1483 = vstv %s1480
          %v1484 = vmul.f32 %v1483, %v1481
          %v1485 = vmul.f32 %v1483, %v1482
          %s1486 = ssub.f32 1.0, %s1480
          %v1487 = vstv %s1486
          %v1488 = vmul.f32 %v1487, %v1476
          %v1489 = vmul.f32 %v1487, %v1477
          %v1490 = vadd.f32 %v1484, %v1488
          %v1491 = vadd.f32 %v1485, %v1489
          %1492 = vst [vmem:[#allocation11] sm:$0xff] %v1490
          %1493 = vst [vmem:[#allocation11 + $0x8] sm:$0xff] %v1491
        $region100: #{tpu_custom_call.1} parent=75 // pred_fallthru
          _
        // Predicated region
        $region101: #{tpu_custom_call.1} parent=75 // pred_check
          %p1494 = pneg %p408
        $region102: #{tpu_custom_call.1} parent=75 // pred_check_branch
          %1496 = sbr.rel (%p1494) target = $region104
        $region103: #{tpu_custom_call.1} parent=75 // pred_region
          %s1498 = ssub.s32 256, 256
          %1499 = vsyncadd [#allocation6], %s1498
          %s1500 = sshll.u32 [#allocation11], 4
          %s1501 = int_to_ptr.vmem [resolvable:$true] %s1500
          %1506 = dma.vmem_to_hbm [thread:$0]  %s1501, 256, %s14, [#allocation6], 128, 128, 8
        $region104: #{tpu_custom_call.1} parent=75 // pred_fallthru
          _
        // Predicated region
        $region105: #{tpu_custom_call.1} parent=75 // pred_check
          %p1507 = pneg %p408
        $region106: #{tpu_custom_call.1} parent=75 // pred_check_branch
          %1509 = sbr.rel (%p1507) target = $region108
        $region107: #{tpu_custom_call.1} parent=75 // pred_region
          %1510 = dma.done [#allocation6], 256
        $region108: #{tpu_custom_call.1} parent=75 // pred_fallthru
          _
      $region76: #{tpu_custom_call.1} parent=5 // pred_fallthru
        _
      %p1511 = scmp.le.s32.totalorder 2, %s24
      // Predicated region
      $region109: #{tpu_custom_call.1} parent=5 // pred_check
        %p1512 = pneg %p1511
      $region110: #{tpu_custom_call.1} parent=5 // pred_check_branch
        %1514 = sbr.rel (%p1512) target = $region112
      $region111: #{tpu_custom_call.1} parent=5 // pred_region
        %s1515 = ssub.s32 %s24, 2
      $region112: #{tpu_custom_call.1} parent=5 // pred_fallthru
        _
    $region6: #{tpu_custom_call.1} parent=1 // loop_footer
      %s28 = sadd.s32 1, %s24
    $region7: #{tpu_custom_call.1} parent=1 // loop_footer_branch
      %23 = sbr.rel target = $region3
    $region8: #{tpu_custom_call.1} parent=1 // loop_exit
      _
    %1516 = vsyncpa [#allocation5], 1
    %s1517 = scalar_lea.sflag [#allocation5], 1
    %1518 = vsyncpa %s1517, 1
    %1519 = vsyncpa [#allocation10], 1
    %1520 = vsyncpa [#allocation6], 1
    %s1521 = scalar_lea.sflag [#allocation6], 1
    %1522 = vsyncpa %s1521, 1
    %1523 = vsyncpa [#allocation7], 1
    %s1524 = scalar_lea.sflag [#allocation7], 1
    %1525 = vsyncpa %s1524, 1

</llo_original>
